<compile_context>
chip_gen: v7x
topology: tpu7x:2x2x1
jax: 0.10.0
libtpu: 0.0.40
codegen_flags: <defaults>
</compile_context>

<pallas_src>
import functools

import jax
import jax.numpy as jnp
from jax.experimental import pallas as pl
from jax.experimental.pallas import tpu as pltpu


# ---------------------------------------------------------------------------
# Fused Pallas kernel
# ---------------------------------------------------------------------------

def _fused_vae_kernel(x_ref, eps_ref,
                      wm_ref, bm_ref, wv_ref, bv_ref, wp_ref, bp_ref,
                      dec_ref, mean_ref, logvar_ref,
                      *, sample):
    """quant_conv (k=1) + DiagonalGaussian sample/mode + post_quant_conv (k=1).

    Channel-major: x block is (1, Cin, tm); all convs are (Cout, Cin) @
    (Cin, tm).  mean / logvar come from two separate small matmuls (weights
    split at the wrapper level, matching torch.chunk(moments, 2, dim=1)).
    """
    x = x_ref[0].astype(jnp.float32)                                 # (Cin, tm)

    mean = (jnp.dot(wm_ref[...], x, preferred_element_type=jnp.float32)
            + bm_ref[...])                                           # (e, tm)
    logvar = (jnp.dot(wv_ref[...], x, preferred_element_type=jnp.float32)
              + bv_ref[...])                                         # (e, tm)
    logvar = jnp.clip(logvar, -30.0, 20.0)

    if sample:
        # eps generated host-side (jax.random.normal) -> tiling-invariant,
        # reproducible; streamed as bf16, upcast here.  Hidden under DMA.
        eps = eps_ref[0].astype(jnp.float32)                         # (e, tm)
        z = mean + jnp.exp(0.5 * logvar) * eps
    else:
        z = mean                                                     # mode()

    dec = (jnp.dot(wp_ref[...], z, preferred_element_type=jnp.float32)
           + bp_ref[...])                                            # (zc, tm)

    dec_ref[0] = dec.astype(dec_ref.dtype)
    mean_ref[0] = mean.astype(mean_ref.dtype)
    logvar_ref[0] = logvar.astype(logvar_ref.dtype)


# ---------------------------------------------------------------------------
# Tile sizing against an explicit VMEM budget
# ---------------------------------------------------------------------------

# Conservative per-lane-column VMEM bytes: double-buffered in/out blocks
# (bf16, sublane-padded to 16 rows) + f32 in-kernel temporaries.
_BYTES_PER_COL_EST = 640
# Keep total kernel VMEM well under v7x's 64 MiB physical (default scoped
# limits: v5e 16 MiB, v6e/v7x 32 MiB -- raised explicitly below).
_VMEM_BUDGET_BYTES = 40 * 1024 * 1024
_VMEM_LIMIT_BYTES = 48 * 1024 * 1024


def _choose_tm(m_sp, tm_max=65536, vmem_budget=_VMEM_BUDGET_BYTES):
    """Largest lane tile: full spatial dim if it fits, else the biggest
    multiple of 128 that stays inside the VMEM budget and tm_max."""
    fit = max(((vmem_budget // _BYTES_PER_COL_EST) // 128) * 128, 128)
    cap = min((tm_max // 128) * 128, fit)
    if m_sp <= cap:
        return m_sp
    return cap


# ---------------------------------------------------------------------------
# pallas_call wrapper
# ---------------------------------------------------------------------------

def vae_forward_core(x3, eps3, params, *, sample, tm_max=65536,
                     dec_dtype=jnp.bfloat16, stats_dtype=jnp.bfloat16):
    """x3: (N, Cin, M) channel-major activations (Cin = 2*z_channels), bf16.
    eps3: (N, embed_dim, M) gaussian noise (ignored when sample=False).

    Returns (dec3, mean3, logvar3) in channel-major (N, C, M) layout.
    NOTE: mean/logvar default to bf16; pass stats_dtype=jnp.float32 if a
    downstream KL term needs full precision.
    """
    n, cin, m_sp = x3.shape
    e = params["quant_w_mean"].shape[0]       # embed_dim
    zc = params["post_w"].shape[0]            # z_channels
    tm = _choose_tm(m_sp, tm_max)
    grid = (n, pl.cdiv(m_sp, tm))             # both axes parallel (v7x megacore)

    def act_map(b, i):                        # activation / output tiles
        return (b, 0, i)

    def const_map(b, i):                      # resident weights / biases
        return (0, 0)

    # Real traffic / flop hints so XLA schedules neighbors around the call.
    itemsize = lambda dt: jnp.dtype(dt).itemsize
    bytes_accessed = int(
        n * cin * m_sp * itemsize(x3.dtype)
        + n * e * m_sp * itemsize(eps3.dtype)
        + n * zc * m_sp * itemsize(dec_dtype)
        + 2 * n * e * m_sp * itemsize(stats_dtype)
        + sum(int(v.size) * itemsize(v.dtype) for v in params.values()))
    flops = int(2 * n * m_sp * (2 * e * cin + zc * e) + 6 * n * e * m_sp)
    transcendentals = int(n * e * m_sp)

    kernel = functools.partial(_fused_vae_kernel, sample=sample)

    return pl.pallas_call(
        kernel,
        out_shape=(
            jax.ShapeDtypeStruct((n, zc, m_sp), dec_dtype),     # post_quant out
            jax.ShapeDtypeStruct((n, e, m_sp), stats_dtype),    # posterior mean
            jax.ShapeDtypeStruct((n, e, m_sp), stats_dtype),    # posterior logvar
        ),
        grid=grid,
        in_specs=[
            pl.BlockSpec((1, cin, tm), act_map),   # x (bf16 activations)
            pl.BlockSpec((1, e, tm), act_map),     # eps (bf16 noise)
            pl.BlockSpec((e, cin), const_map),     # W_mean
            pl.BlockSpec((e, 1), const_map),       # b_mean
            pl.BlockSpec((e, cin), const_map),     # W_logvar
            pl.BlockSpec((e, 1), const_map),       # b_logvar
            pl.BlockSpec((zc, e), const_map),      # W_post
            pl.BlockSpec((zc, 1), const_map),      # b_post
        ],
        out_specs=(
            pl.BlockSpec((1, zc, tm), act_map),
            pl.BlockSpec((1, e, tm), act_map),
            pl.BlockSpec((1, e, tm), act_map),
        ),
        compiler_params=pltpu.CompilerParams(
            dimension_semantics=("parallel", "parallel"),
            vmem_limit_bytes=_VMEM_LIMIT_BYTES,
        ),
        cost_estimate=pl.CostEstimate(
            flops=flops,
            transcendentals=transcendentals,
            bytes_accessed=bytes_accessed),
    )(x3, eps3,
      params["quant_w_mean"], params["quant_b_mean"],
      params["quant_w_logvar"], params["quant_b_logvar"],
      params["post_w"], params["post_b"])


# ---------------------------------------------------------------------------
# AutoencoderKL forward (synthetic, deterministic parameters)
# ---------------------------------------------------------------------------

def init_params(key, z_channels, embed_dim):
    """PyTorch Conv3d weights (Cout, Cin, 1, 1, 1) stored as (Cout, Cin);
    quant_conv is pre-split into mean/logvar halves (matches chunk(., 2, dim=1))."""
    k1, k2, k3, k4 = jax.random.split(key, 4)
    quant_w = 0.1 * jax.random.normal(k1, (2 * embed_dim, 2 * z_channels), jnp.float32)
    quant_b = 0.05 * jax.random.normal(k2, (2 * embed_dim,), jnp.float32)
    post_w = 0.1 * jax.random.normal(k3, (z_channels, embed_dim), jnp.float32)
    post_b = 0.05 * jax.random.normal(k4, (z_channels,), jnp.float32)
    return dict(
        quant_w_mean=quant_w[:embed_dim],
        quant_b_mean=quant_b[:embed_dim].reshape(embed_dim, 1),
        quant_w_logvar=quant_w[embed_dim:],
        quant_b_logvar=quant_b[embed_dim:].reshape(embed_dim, 1),
        post_w=post_w,
        post_b=post_b.reshape(z_channels, 1),
    )


def autoencoder_kl_forward(params, x, rng_key, sample_posterior=True):
    """Mirrors AutoencoderKL.forward: returns (dec, posterior).

    posterior is a dict with 'mean' and 'logvar' in NCDHW layout.
    """
    n, c, d, h, w = x.shape
    m = d * h * w
    e = params["quant_w_mean"].shape[0]

    # encode: h = encoder(x)
    # TODO(synk): encoder comes from an external ddconfig -> identity stand-in;
    # assumed to emit bf16 activations (halves the dominant HBM input stream).
    h_act = x.reshape(n, c, m).astype(jnp.bfloat16)   # free reshape, channel-major

    # Gaussian noise generated once on the host side of the call: tiling-
    # invariant and bit-reproducible for a given key (unused when mode()).
    if sample_posterior:
        eps3 = jax.random.normal(rng_key, (n, e, m), dtype=jnp.bfloat16)
    else:
        eps3 = jnp.zeros((n, e, m), jnp.bfloat16)

    dec3, mean3, logvar3 = vae_forward_core(
        h_act, eps3, params, sample=sample_posterior)

    # decode: dec = decoder(post_quant_conv(z))
    # TODO(synk): decoder comes from an external ddconfig -> identity stand-in.
    zc = dec3.shape[1]
    dec = dec3.reshape(n, zc, d, h, w)
    posterior = dict(
        mean=mean3.reshape(n, e, d, h, w),
        logvar=logvar3.reshape(n, e, d, h, w),
    )
    return dec, posterior


# ---------------------------------------------------------------------------
# Main
# ---------------------------------------------------------------------------

if __name__ == "__main__":
    key = jax.random.PRNGKey(0)
    k_params, k_x, k_eps = jax.random.split(key, 3)

    # Small synthetic config: double_z => encoder output has 2*z_channels chans.
    z_channels = 4
    embed_dim = 4
    N, D, H, W = 2, 4, 16, 16

    params = init_params(k_params, z_channels, embed_dim)
    x = jax.random.normal(k_x, (N, 2 * z_channels, D, H, W), jnp.float32)

    fwd = jax.jit(functools.partial(autoencoder_kl_forward, sample_posterior=True))
    dec, posterior = fwd(params, x, k_eps)
    jax.block_until_ready((dec, posterior))

    assert dec.shape == (N, z_channels, D, H, W), dec.shape
    assert posterior["mean"].shape == (N, embed_dim, D, H, W)
    assert posterior["logvar"].shape == (N, embed_dim, D, H, W)
    assert bool(jnp.isfinite(dec.astype(jnp.float32)).all())
    print("KERNEL_OK")
</pallas_src>

<mosaic_0001>
module attributes {stable_mosaic.version = 11 : i64} {
  func.func @_fused_vae_kernel(%arg0: i32, %arg1: i32, %arg2: memref<1x8x1024xbf16, #tpu.memory_space<vmem>>, %arg3: memref<1x4x1024xbf16, #tpu.memory_space<vmem>>, %arg4: memref<4x8xf32, #tpu.memory_space<vmem>>, %arg5: memref<4x1xf32, #tpu.memory_space<vmem>>, %arg6: memref<4x8xf32, #tpu.memory_space<vmem>>, %arg7: memref<4x1xf32, #tpu.memory_space<vmem>>, %arg8: memref<4x4xf32, #tpu.memory_space<vmem>>, %arg9: memref<4x1xf32, #tpu.memory_space<vmem>>, %arg10: memref<1x4x1024xbf16, #tpu.memory_space<vmem>>, %arg11: memref<1x4x1024xbf16, #tpu.memory_space<vmem>>, %arg12: memref<1x4x1024xbf16, #tpu.memory_space<vmem>>) attributes {dimension_semantics = [#tpu.dimension_semantics<parallel>, #tpu.dimension_semantics<parallel>], iteration_bounds = array<i64: 2, 1>, scalar_prefetch = 0 : i64, scratch_operands = 0 : i64, tpu.core_type = #tpu.core_type<tc>, window_params = [{transform_indices = @transform_0, window_bounds = array<i64: 1, 8, 1024>}, {transform_indices = @transform_1, window_bounds = array<i64: 1, 4, 1024>}, {pipeline_mode = #tpu.pipeline_mode<synchronous>, transform_indices = @transform_2, window_bounds = array<i64: 4, 8>}, {pipeline_mode = #tpu.pipeline_mode<synchronous>, transform_indices = @transform_3, window_bounds = array<i64: 4, 1>}, {pipeline_mode = #tpu.pipeline_mode<synchronous>, transform_indices = @transform_4, window_bounds = array<i64: 4, 8>}, {pipeline_mode = #tpu.pipeline_mode<synchronous>, transform_indices = @transform_5, window_bounds = array<i64: 4, 1>}, {pipeline_mode = #tpu.pipeline_mode<synchronous>, transform_indices = @transform_6, window_bounds = array<i64: 4, 4>}, {pipeline_mode = #tpu.pipeline_mode<synchronous>, transform_indices = @transform_7, window_bounds = array<i64: 4, 1>}, {transform_indices = @transform_8, window_bounds = array<i64: 1, 4, 1024>}, {transform_indices = @transform_9, window_bounds = array<i64: 1, 4, 1024>}, {transform_indices = @transform_10, window_bounds = array<i64: 1, 4, 1024>}]} {
    %c0 = arith.constant 0 : index
    %c0_0 = arith.constant 0 : index
    %c0_1 = arith.constant 0 : index
    %0 = vector.load %arg2[%c0, %c0_0, %c0_1] : memref<1x8x1024xbf16, #tpu.memory_space<vmem>>, vector<1x8x1024xbf16>
    %1 = vector.shape_cast %0 : vector<1x8x1024xbf16> to vector<8x1024xbf16>
    %2 = arith.extf %1 : vector<8x1024xbf16> to vector<8x1024xf32>
    %c0_2 = arith.constant 0 : index
    %c0_3 = arith.constant 0 : index
    %3 = vector.load %arg4[%c0_2, %c0_3] : memref<4x8xf32, #tpu.memory_space<vmem>>, vector<4x8xf32>
    %cst = arith.constant dense<0.000000e+00> : vector<4x1024xf32>
    %4 = tpu.matmul %3, %2, %cst {dimension_numbers = #tpu.dot_dimension_numbers<[1], [0], [0], [1], [0, 0, 1, 1], [], []>} : vector<4x8xf32>, vector<8x1024xf32>, vector<4x1024xf32> -> vector<4x1024xf32>
    %c0_4 = arith.constant 0 : index
    %c0_5 = arith.constant 0 : index
    %5 = vector.load %arg5[%c0_4, %c0_5] : memref<4x1xf32, #tpu.memory_space<vmem>>, vector<4x1xf32>
    %6 = vector.broadcast %5 : vector<4x1xf32> to vector<4x1024xf32>
    %7 = arith.addf %4, %6 : vector<4x1024xf32>
    %c0_6 = arith.constant 0 : index
    %c0_7 = arith.constant 0 : index
    %8 = vector.load %arg6[%c0_6, %c0_7] : memref<4x8xf32, #tpu.memory_space<vmem>>, vector<4x8xf32>
    %cst_8 = arith.constant dense<0.000000e+00> : vector<4x1024xf32>
    %9 = tpu.matmul %8, %2, %cst_8 {dimension_numbers = #tpu.dot_dimension_numbers<[1], [0], [0], [1], [0, 0, 1, 1], [], []>} : vector<4x8xf32>, vector<8x1024xf32>, vector<4x1024xf32> -> vector<4x1024xf32>
    %c0_9 = arith.constant 0 : index
    %c0_10 = arith.constant 0 : index
    %10 = vector.load %arg7[%c0_9, %c0_10] : memref<4x1xf32, #tpu.memory_space<vmem>>, vector<4x1xf32>
    %11 = vector.broadcast %10 : vector<4x1xf32> to vector<4x1024xf32>
    %12 = arith.addf %9, %11 : vector<4x1024xf32>
    %cst_11 = arith.constant -3.000000e+01 : f32
    %cst_12 = arith.constant 2.000000e+01 : f32
    %13 = vector.broadcast %cst_11 : f32 to vector<4x1024xf32>
    %14 = arith.maximumf %13, %12 : vector<4x1024xf32>
    %15 = vector.broadcast %cst_12 : f32 to vector<4x1024xf32>
    %16 = arith.minimumf %15, %14 : vector<4x1024xf32>
    %c0_13 = arith.constant 0 : index
    %c0_14 = arith.constant 0 : index
    %c0_15 = arith.constant 0 : index
    %17 = vector.load %arg3[%c0_13, %c0_14, %c0_15] : memref<1x4x1024xbf16, #tpu.memory_space<vmem>>, vector<1x4x1024xbf16>
    %18 = vector.shape_cast %17 : vector<1x4x1024xbf16> to vector<4x1024xbf16>
    %19 = arith.extf %18 : vector<4x1024xbf16> to vector<4x1024xf32>
    %cst_16 = arith.constant 5.000000e-01 : f32
    %20 = vector.broadcast %cst_16 : f32 to vector<4x1024xf32>
    %21 = arith.mulf %20, %16 : vector<4x1024xf32>
    %22 = math.exp %21 : vector<4x1024xf32>
    %23 = arith.mulf %22, %19 : vector<4x1024xf32>
    %24 = arith.addf %7, %23 : vector<4x1024xf32>
    %c0_17 = arith.constant 0 : index
    %c0_18 = arith.constant 0 : index
    %25 = vector.load %arg8[%c0_17, %c0_18] : memref<4x4xf32, #tpu.memory_space<vmem>>, vector<4x4xf32>
    %cst_19 = arith.constant dense<0.000000e+00> : vector<4x1024xf32>
    %26 = tpu.matmul %25, %24, %cst_19 {dimension_numbers = #tpu.dot_dimension_numbers<[1], [0], [0], [1], [0, 0, 1, 1], [], []>} : vector<4x4xf32>, vector<4x1024xf32>, vector<4x1024xf32> -> vector<4x1024xf32>
    %c0_20 = arith.constant 0 : index
    %c0_21 = arith.constant 0 : index
    %27 = vector.load %arg9[%c0_20, %c0_21] : memref<4x1xf32, #tpu.memory_space<vmem>>, vector<4x1xf32>
    %28 = vector.broadcast %27 : vector<4x1xf32> to vector<4x1024xf32>
    %29 = arith.addf %26, %28 : vector<4x1024xf32>
    %30 = arith.truncf %29 : vector<4x1024xf32> to vector<4x1024xbf16>
    %c0_22 = arith.constant 0 : index
    %c0_23 = arith.constant 0 : index
    %c0_24 = arith.constant 0 : index
    %31 = vector.load %arg10[%c0_22, %c0_23, %c0_24] : memref<1x4x1024xbf16, #tpu.memory_space<vmem>>, vector<1x4x1024xbf16>
    %32 = vector.shape_cast %31 : vector<1x4x1024xbf16> to vector<4x1024xbf16>
    %33 = vector.shape_cast %30 : vector<4x1024xbf16> to vector<1x4x1024xbf16>
    tpu.vector_store %arg10[%c0_22, %c0_23, %c0_24], %33 {strides = array<i32>} : memref<1x4x1024xbf16, #tpu.memory_space<vmem>>, vector<1x4x1024xbf16>,
    %34 = arith.truncf %7 : vector<4x1024xf32> to vector<4x1024xbf16>
    %c0_25 = arith.constant 0 : index
    %c0_26 = arith.constant 0 : index
    %c0_27 = arith.constant 0 : index
    %35 = vector.load %arg11[%c0_25, %c0_26, %c0_27] : memref<1x4x1024xbf16, #tpu.memory_space<vmem>>, vector<1x4x1024xbf16>
    %36 = vector.shape_cast %35 : vector<1x4x1024xbf16> to vector<4x1024xbf16>
    %37 = vector.shape_cast %34 : vector<4x1024xbf16> to vector<1x4x1024xbf16>
    tpu.vector_store %arg11[%c0_25, %c0_26, %c0_27], %37 {strides = array<i32>} : memref<1x4x1024xbf16, #tpu.memory_space<vmem>>, vector<1x4x1024xbf16>,
    %38 = arith.truncf %16 : vector<4x1024xf32> to vector<4x1024xbf16>
    %c0_28 = arith.constant 0 : index
    %c0_29 = arith.constant 0 : index
    %c0_30 = arith.constant 0 : index
    %39 = vector.load %arg12[%c0_28, %c0_29, %c0_30] : memref<1x4x1024xbf16, #tpu.memory_space<vmem>>, vector<1x4x1024xbf16>
    %40 = vector.shape_cast %39 : vector<1x4x1024xbf16> to vector<4x1024xbf16>
    %41 = vector.shape_cast %38 : vector<4x1024xbf16> to vector<1x4x1024xbf16>
    tpu.vector_store %arg12[%c0_28, %c0_29, %c0_30], %41 {strides = array<i32>} : memref<1x4x1024xbf16, #tpu.memory_space<vmem>>, vector<1x4x1024xbf16>,
    return
  }
  func.func @transform_0(%arg0: i32, %arg1: i32) -> (i32, i32, i32) {
    %c0_i32 = arith.constant 0 : i32
    %c0_i32_0 = arith.constant 0 : i32
    return %arg0, %c0_i32, %arg1 : i32, i32, i32
  }
  func.func @transform_1(%arg0: i32, %arg1: i32) -> (i32, i32, i32) {
    %c0_i32 = arith.constant 0 : i32
    %c0_i32_0 = arith.constant 0 : i32
    return %arg0, %c0_i32, %arg1 : i32, i32, i32
  }
  func.func @transform_2(%arg0: i32, %arg1: i32) -> (i32, i32) {
    %c0_i32 = arith.constant 0 : i32
    %c0_i32_0 = arith.constant 0 : i32
    %c0_i32_1 = arith.constant 0 : i32
    return %c0_i32, %c0_i32_0 : i32, i32
  }
  func.func @transform_3(%arg0: i32, %arg1: i32) -> (i32, i32) {
    %c0_i32 = arith.constant 0 : i32
    %c0_i32_0 = arith.constant 0 : i32
    %c0_i32_1 = arith.constant 0 : i32
    return %c0_i32, %c0_i32_0 : i32, i32
  }
  func.func @transform_4(%arg0: i32, %arg1: i32) -> (i32, i32) {
    %c0_i32 = arith.constant 0 : i32
    %c0_i32_0 = arith.constant 0 : i32
    %c0_i32_1 = arith.constant 0 : i32
    return %c0_i32, %c0_i32_0 : i32, i32
  }
  func.func @transform_5(%arg0: i32, %arg1: i32) -> (i32, i32) {
    %c0_i32 = arith.constant 0 : i32
    %c0_i32_0 = arith.constant 0 : i32
    %c0_i32_1 = arith.constant 0 : i32
    return %c0_i32, %c0_i32_0 : i32, i32
  }
  func.func @transform_6(%arg0: i32, %arg1: i32) -> (i32, i32) {
    %c0_i32 = arith.constant 0 : i32
    %c0_i32_0 = arith.constant 0 : i32
    %c0_i32_1 = arith.constant 0 : i32
    return %c0_i32, %c0_i32_0 : i32, i32
  }
  func.func @transform_7(%arg0: i32, %arg1: i32) -> (i32, i32) {
    %c0_i32 = arith.constant 0 : i32
    %c0_i32_0 = arith.constant 0 : i32
    %c0_i32_1 = arith.constant 0 : i32
    return %c0_i32, %c0_i32_0 : i32, i32
  }
  func.func @transform_8(%arg0: i32, %arg1: i32) -> (i32, i32, i32) {
    %c0_i32 = arith.constant 0 : i32
    %c0_i32_0 = arith.constant 0 : i32
    return %arg0, %c0_i32, %arg1 : i32, i32, i32
  }
  func.func @transform_9(%arg0: i32, %arg1: i32) -> (i32, i32, i32) {
    %c0_i32 = arith.constant 0 : i32
    %c0_i32_0 = arith.constant 0 : i32
    return %arg0, %c0_i32, %arg1 : i32, i32, i32
  }
  func.func @transform_10(%arg0: i32, %arg1: i32) -> (i32, i32, i32) {
    %c0_i32 = arith.constant 0 : i32
    %c0_i32_0 = arith.constant 0 : i32
    return %arg0, %c0_i32, %arg1 : i32, i32, i32
  }
}

</mosaic_0001>

<llo_original>
// kernel: autoencoder_kl_forward.1
$region0: #{autoencoder_kl_forward.1}
  #allocation0 [shape = 'u32[]', space=smem, size = 0x4, offset = 0x4, fixed_abs, tag = 'smem constant byte address 0x4 - core index']
  #allocation1 [shape = 'u32[144,128]{1,0:T(1,128)}', space=vmem, size = 0x12000, scoped, tag = 'internal scratch']
  %s0 = inlined_call_operand.vmem [shape: bf16[2,8,1024], index: 0, kind: input, shape index: {}]
  %s1 = inlined_call_operand.vmem [shape: bf16[2,4,1024], index: 1, kind: input, shape index: {}]
  %s2 = inlined_call_operand.vmem [shape: f32[4,8], index: 2, kind: input, shape index: {}]
  %s3 = inlined_call_operand.vmem [shape: f32[4,1], index: 3, kind: input, shape index: {}]
  %s4 = inlined_call_operand.vmem [shape: f32[4,8], index: 4, kind: input, shape index: {}]
  %s5 = inlined_call_operand.vmem [shape: f32[4,1], index: 5, kind: input, shape index: {}]
  %s6 = inlined_call_operand.vmem [shape: f32[4,4], index: 6, kind: input, shape index: {}]
  %s7 = inlined_call_operand.vmem [shape: f32[4,1], index: 7, kind: input, shape index: {}]
  %s8 = inlined_call_operand.vmem [shape: bf16[2,4,1024], index: 8, kind: output, shape index: {0}]
  %s9 = inlined_call_operand.vmem [shape: bf16[2,4,1024], index: 9, kind: output, shape index: {1}]
  %s10 = inlined_call_operand.vmem [shape: bf16[2,4,1024], index: 10, kind: output, shape index: {2}]
  %11 = xla_tuple %s8, %s9, %s10
  %s12 = sld [smem:[#allocation0]]
  $region81: #{autoencoder_kl_forward.1} parent=0
    _
  %s14 = ssub.s32 1, %s12
  %s15 = scalar_select 0, %s14, %s12
  loop: start=0, step=1, limit=4
  $region2: #{autoencoder_kl_forward.1} parent=0 // loop_pre_header
    _
  $region3: #{autoencoder_kl_forward.1} parent=0 // loop_header
    %s17 = sphi 0, %s21
    %p18 = scmp.ge.s32.totalorder %s17, 4
    %s24 = sphi 0, %s36
    %s25 = sphi 0, %s32
    %s26 = sphi 0, %s24
    %s27 = sphi 0, %s25
    %s28 = sphi 0, %s26
    %s29 = sphi 0, %s27
    %s41 = sphi 0, %s43
    %s44 = sphi 0, %s41
    %s45 = sphi 0, %s44
    %s61 = sphi 0, %s45
    %s69 = sphi 0, %s71
    %s72 = sphi 0, %s69
    %s73 = sphi 0, %s72
    %s89 = sphi 0, %s73
    %s93 = sphi 0, %s93
    %s95 = sphi 0, %s93
    %s96 = sphi 0, %s95
    %s110 = sphi 0, %s96
    %s114 = sphi 0, %s114
    %s116 = sphi 0, %s114
    %s117 = sphi 0, %s116
    %s131 = sphi 0, %s117
    %s135 = sphi 0, %s135
    %s137 = sphi 0, %s135
    %s138 = sphi 0, %s137
    %s152 = sphi 0, %s138
    %s156 = sphi 0, %s156
    %s158 = sphi 0, %s156
    %s159 = sphi 0, %s158
    %s173 = sphi 0, %s159
    %s177 = sphi 0, %s177
    %s179 = sphi 0, %s177
    %s180 = sphi 0, %s179
    %s194 = sphi 0, %s180
    %s198 = sphi 0, %s198
    %s200 = sphi 0, %s198
    %s201 = sphi 0, %s200
    %s215 = sphi 0, %s201
    %s223 = sphi 0, %s225
    %s226 = sphi 0, %s223
    %s227 = sphi 0, %s226
    %s243 = sphi 0, %s227
    %s251 = sphi 0, %s253
    %s254 = sphi 0, %s251
    %s255 = sphi 0, %s254
    %s271 = sphi 0, %s255
    %s279 = sphi 0, %s281
    %s282 = sphi 0, %s279
    %s283 = sphi 0, %s282
    %s299 = sphi 0, %s283
  $region4: #{autoencoder_kl_forward.1} parent=0 // loop_header_branch
    %20 = sbr.rel (%p18) target = $region8
  $region5: #{autoencoder_kl_forward.1} parent=0 // loop_body
    %s22 = ssub.s32 %s17, 1
    %s23 = ssub.s32 %s17, 2
    %s30 = sadd.s32 1, %s25
    %p31 = scmp.ge.s32.totalorder %s30, 1
    %s32 = scalar_select %p31, 0, %s30
    %s33 = sadd.s32 1, %s24
    %s34 = scalar_select %p31, %s33, %s24
    %p35 = scmp.ge.s32.totalorder %s34, 2
    %s36 = scalar_select %p35, 0, %s34
    %s37 = ssub.s32 %s24, %s36
    %s38 = ssub.s32 %s25, %s32
    %s39 = sor.u32 %s37, %s38
    %p40 = scmp.eq.s32.totalorder %s39, 0
    %s42 = sadd.s32 %s41, 1
    %s43 = scalar_select %p40, %s41, %s42
    %p46 = pneg %p40
    %p47 = scmp.eq.s32.totalorder %s17, 1
    %p48 = por %p46, %p47
    %p49 = scmp.ne.s32.totalorder %s41, %s44
    %p50 = scmp.eq.s32.totalorder %s17, 0
    %p51 = por %p49, %p50
    %p52 = scmp.ne.s32.totalorder %s41, %s44
    %p53 = scmp.eq.s32.totalorder %s22, 1
    %p54 = por %p52, %p53
    %p55 = scmp.ne.s32.totalorder %s44, %s45
    %p56 = scmp.eq.s32.totalorder %s22, 0
    %p57 = por %p55, %p56
    %p58 = scmp.ne.s32.totalorder %s44, %s45
    %p59 = scmp.eq.s32.totalorder %s23, 1
    %p60 = por %p58, %p59
    %p62 = scmp.ne.s32.totalorder %s45, %s61
    %p63 = scmp.eq.s32.totalorder %s23, 0
    %p64 = por %p62, %p63
    %s65 = ssub.s32 %s24, %s36
    %s66 = ssub.s32 %s25, %s32
    %s67 = sor.u32 %s65, %s66
    %p68 = scmp.eq.s32.totalorder %s67, 0
    %s70 = sadd.s32 %s69, 1
    %s71 = scalar_select %p68, %s69, %s70
    %p74 = pneg %p68
    %p75 = scmp.eq.s32.totalorder %s17, 1
    %p76 = por %p74, %p75
    %p77 = scmp.ne.s32.totalorder %s69, %s72
    %p78 = scmp.eq.s32.totalorder %s17, 0
    %p79 = por %p77, %p78
    %p80 = scmp.ne.s32.totalorder %s69, %s72
    %p81 = scmp.eq.s32.totalorder %s22, 1
    %p82 = por %p80, %p81
    %p83 = scmp.ne.s32.totalorder %s72, %s73
    %p84 = scmp.eq.s32.totalorder %s22, 0
    %p85 = por %p83, %p84
    %p86 = scmp.ne.s32.totalorder %s72, %s73
    %p87 = scmp.eq.s32.totalorder %s23, 1
    %p88 = por %p86, %p87
    %p90 = scmp.ne.s32.totalorder %s73, %s89
    %p91 = scmp.eq.s32.totalorder %s23, 0
    %p92 = por %p90, %p91
    %s94 = sadd.s32 %s93, 1
    %p97 = scmp.eq.s32.totalorder %s17, 1
    %p98 = scmp.ne.s32.totalorder %s93, %s95
    %p99 = scmp.eq.s32.totalorder %s17, 0
    %p100 = por %p98, %p99
    %p101 = scmp.ne.s32.totalorder %s93, %s95
    %p102 = scmp.eq.s32.totalorder %s22, 1
    %p103 = por %p101, %p102
    %p104 = scmp.ne.s32.totalorder %s95, %s96
    %p105 = scmp.eq.s32.totalorder %s22, 0
    %p106 = por %p104, %p105
    %p107 = scmp.ne.s32.totalorder %s95, %s96
    %p108 = scmp.eq.s32.totalorder %s23, 1
    %p109 = por %p107, %p108
    %p111 = scmp.ne.s32.totalorder %s96, %s110
    %p112 = scmp.eq.s32.totalorder %s23, 0
    %p113 = por %p111, %p112
    %s115 = sadd.s32 %s114, 1
    %p118 = scmp.eq.s32.totalorder %s17, 1
    %p119 = scmp.ne.s32.totalorder %s114, %s116
    %p120 = scmp.eq.s32.totalorder %s17, 0
    %p121 = por %p119, %p120
    %p122 = scmp.ne.s32.totalorder %s114, %s116
    %p123 = scmp.eq.s32.totalorder %s22, 1
    %p124 = por %p122, %p123
    %p125 = scmp.ne.s32.totalorder %s116, %s117
    %p126 = scmp.eq.s32.totalorder %s22, 0
    %p127 = por %p125, %p126
    %p128 = scmp.ne.s32.totalorder %s116, %s117
    %p129 = scmp.eq.s32.totalorder %s23, 1
    %p130 = por %p128, %p129
    %p132 = scmp.ne.s32.totalorder %s117, %s131
    %p133 = scmp.eq.s32.totalorder %s23, 0
    %p134 = por %p132, %p133
    %s136 = sadd.s32 %s135, 1
    %p139 = scmp.eq.s32.totalorder %s17, 1
    %p140 = scmp.ne.s32.totalorder %s135, %s137
    %p141 = scmp.eq.s32.totalorder %s17, 0
    %p142 = por %p140, %p141
    %p143 = scmp.ne.s32.totalorder %s135, %s137
    %p144 = scmp.eq.s32.totalorder %s22, 1
    %p145 = por %p143, %p144
    %p146 = scmp.ne.s32.totalorder %s137, %s138
    %p147 = scmp.eq.s32.totalorder %s22, 0
    %p148 = por %p146, %p147
    %p149 = scmp.ne.s32.totalorder %s137, %s138
    %p150 = scmp.eq.s32.totalorder %s23, 1
    %p151 = por %p149, %p150
    %p153 = scmp.ne.s32.totalorder %s138, %s152
    %p154 = scmp.eq.s32.totalorder %s23, 0
    %p155 = por %p153, %p154
    %s157 = sadd.s32 %s156, 1
    %p160 = scmp.eq.s32.totalorder %s17, 1
    %p161 = scmp.ne.s32.totalorder %s156, %s158
    %p162 = scmp.eq.s32.totalorder %s17, 0
    %p163 = por %p161, %p162
    %p164 = scmp.ne.s32.totalorder %s156, %s158
    %p165 = scmp.eq.s32.totalorder %s22, 1
    %p166 = por %p164, %p165
    %p167 = scmp.ne.s32.totalorder %s158, %s159
    %p168 = scmp.eq.s32.totalorder %s22, 0
    %p169 = por %p167, %p168
    %p170 = scmp.ne.s32.totalorder %s158, %s159
    %p171 = scmp.eq.s32.totalorder %s23, 1
    %p172 = por %p170, %p171
    %p174 = scmp.ne.s32.totalorder %s159, %s173
    %p175 = scmp.eq.s32.totalorder %s23, 0
    %p176 = por %p174, %p175
    %s178 = sadd.s32 %s177, 1
    %p181 = scmp.eq.s32.totalorder %s17, 1
    %p182 = scmp.ne.s32.totalorder %s177, %s179
    %p183 = scmp.eq.s32.totalorder %s17, 0
    %p184 = por %p182, %p183
    %p185 = scmp.ne.s32.totalorder %s177, %s179
    %p186 = scmp.eq.s32.totalorder %s22, 1
    %p187 = por %p185, %p186
    %p188 = scmp.ne.s32.totalorder %s179, %s180
    %p189 = scmp.eq.s32.totalorder %s22, 0
    %p190 = por %p188, %p189
    %p191 = scmp.ne.s32.totalorder %s179, %s180
    %p192 = scmp.eq.s32.totalorder %s23, 1
    %p193 = por %p191, %p192
    %p195 = scmp.ne.s32.totalorder %s180, %s194
    %p196 = scmp.eq.s32.totalorder %s23, 0
    %p197 = por %p195, %p196
    %s199 = sadd.s32 %s198, 1
    %p202 = scmp.eq.s32.totalorder %s17, 1
    %p203 = scmp.ne.s32.totalorder %s198, %s200
    %p204 = scmp.eq.s32.totalorder %s17, 0
    %p205 = por %p203, %p204
    %p206 = scmp.ne.s32.totalorder %s198, %s200
    %p207 = scmp.eq.s32.totalorder %s22, 1
    %p208 = por %p206, %p207
    %p209 = scmp.ne.s32.totalorder %s200, %s201
    %p210 = scmp.eq.s32.totalorder %s22, 0
    %p211 = por %p209, %p210
    %p212 = scmp.ne.s32.totalorder %s200, %s201
    %p213 = scmp.eq.s32.totalorder %s23, 1
    %p214 = por %p212, %p213
    %p216 = scmp.ne.s32.totalorder %s201, %s215
    %p217 = scmp.eq.s32.totalorder %s23, 0
    %p218 = por %p216, %p217
    %s219 = ssub.s32 %s24, %s36
    %s220 = ssub.s32 %s25, %s32
    %s221 = sor.u32 %s219, %s220
    %p222 = scmp.eq.s32.totalorder %s221, 0
    %s224 = sadd.s32 %s223, 1
    %s225 = scalar_select %p222, %s223, %s224
    %p228 = pneg %p222
    %p229 = scmp.eq.s32.totalorder %s17, 1
    %p230 = por %p228, %p229
    %p231 = scmp.ne.s32.totalorder %s223, %s226
    %p232 = scmp.eq.s32.totalorder %s17, 0
    %p233 = por %p231, %p232
    %p234 = scmp.ne.s32.totalorder %s223, %s226
    %p235 = scmp.eq.s32.totalorder %s22, 1
    %p236 = por %p234, %p235
    %p237 = scmp.ne.s32.totalorder %s226, %s227
    %p238 = scmp.eq.s32.totalorder %s22, 0
    %p239 = por %p237, %p238
    %p240 = scmp.ne.s32.totalorder %s226, %s227
    %p241 = scmp.eq.s32.totalorder %s23, 1
    %p242 = por %p240, %p241
    %p244 = scmp.ne.s32.totalorder %s227, %s243
    %p245 = scmp.eq.s32.totalorder %s23, 0
    %p246 = por %p244, %p245
    %s247 = ssub.s32 %s24, %s36
    %s248 = ssub.s32 %s25, %s32
    %s249 = sor.u32 %s247, %s248
    %p250 = scmp.eq.s32.totalorder %s249, 0
    %s252 = sadd.s32 %s251, 1
    %s253 = scalar_select %p250, %s251, %s252
    %p256 = pneg %p250
    %p257 = scmp.eq.s32.totalorder %s17, 1
    %p258 = por %p256, %p257
    %p259 = scmp.ne.s32.totalorder %s251, %s254
    %p260 = scmp.eq.s32.totalorder %s17, 0
    %p261 = por %p259, %p260
    %p262 = scmp.ne.s32.totalorder %s251, %s254
    %p263 = scmp.eq.s32.totalorder %s22, 1
    %p264 = por %p262, %p263
    %p265 = scmp.ne.s32.totalorder %s254, %s255
    %p266 = scmp.eq.s32.totalorder %s22, 0
    %p267 = por %p265, %p266
    %p268 = scmp.ne.s32.totalorder %s254, %s255
    %p269 = scmp.eq.s32.totalorder %s23, 1
    %p270 = por %p268, %p269
    %p272 = scmp.ne.s32.totalorder %s255, %s271
    %p273 = scmp.eq.s32.totalorder %s23, 0
    %p274 = por %p272, %p273
    %s275 = ssub.s32 %s24, %s36
    %s276 = ssub.s32 %s25, %s32
    %s277 = sor.u32 %s275, %s276
    %p278 = scmp.eq.s32.totalorder %s277, 0
    %s280 = sadd.s32 %s279, 1
    %s281 = scalar_select %p278, %s279, %s280
    %p284 = pneg %p278
    %p285 = scmp.eq.s32.totalorder %s17, 1
    %p286 = por %p284, %p285
    %p287 = scmp.ne.s32.totalorder %s279, %s282
    %p288 = scmp.eq.s32.totalorder %s17, 0
    %p289 = por %p287, %p288
    %p290 = scmp.ne.s32.totalorder %s279, %s282
    %p291 = scmp.eq.s32.totalorder %s22, 1
    %p292 = por %p290, %p291
    %p293 = scmp.ne.s32.totalorder %s282, %s283
    %p294 = scmp.eq.s32.totalorder %s22, 0
    %p295 = por %p293, %p294
    %p296 = scmp.ne.s32.totalorder %s282, %s283
    %p297 = scmp.eq.s32.totalorder %s23, 1
    %p298 = por %p296, %p297
    %p300 = scmp.ne.s32.totalorder %s283, %s299
    %p301 = scmp.eq.s32.totalorder %s23, 0
    %p302 = por %p300, %p301
    %p303 = scmp.le.s32.totalorder 1, %s17
    %p304 = scmp.lt.s32.totalorder %s17, 3
    %p305 = pnand %p303, %p304
    %p306 = pneg %p305
    // Predicated region
    $region9: #{autoencoder_kl_forward.1} parent=5 // pred_check
      _
    $region10: #{autoencoder_kl_forward.1} parent=5 // pred_check_branch
      %308 = sbr.rel (%p305) target = $region12
    $region11: #{autoencoder_kl_forward.1} parent=5 // pred_region
      %s309 = ssub.s32 %s17, 1
      // Predicated region
      $region13: #{autoencoder_kl_forward.1} parent=11 // pred_check
        %p310 = pneg %p106
      $region14: #{autoencoder_kl_forward.1} parent=11 // pred_check_branch
        %312 = sbr.rel (%p310) target = $region16
      $region15: #{autoencoder_kl_forward.1} parent=11 // pred_region
        _
      $region16: #{autoencoder_kl_forward.1} parent=11 // pred_fallthru
        _
      // Predicated region
      $region17: #{autoencoder_kl_forward.1} parent=11 // pred_check
        %p313 = pneg %p127
      $region18: #{autoencoder_kl_forward.1} parent=11 // pred_check_branch
        %315 = sbr.rel (%p313) target = $region20
      $region19: #{autoencoder_kl_forward.1} parent=11 // pred_region
        _
      $region20: #{autoencoder_kl_forward.1} parent=11 // pred_fallthru
        _
      // Predicated region
      $region21: #{autoencoder_kl_forward.1} parent=11 // pred_check
        %p316 = pneg %p148
      $region22: #{autoencoder_kl_forward.1} parent=11 // pred_check_branch
        %318 = sbr.rel (%p316) target = $region24
      $region23: #{autoencoder_kl_forward.1} parent=11 // pred_region
        _
      $region24: #{autoencoder_kl_forward.1} parent=11 // pred_fallthru
        _
      // Predicated region
      $region25: #{autoencoder_kl_forward.1} parent=11 // pred_check
        %p319 = pneg %p169
      $region26: #{autoencoder_kl_forward.1} parent=11 // pred_check_branch
        %321 = sbr.rel (%p319) target = $region28
      $region27: #{autoencoder_kl_forward.1} parent=11 // pred_region
        _
      $region28: #{autoencoder_kl_forward.1} parent=11 // pred_fallthru
        _
      // Predicated region
      $region29: #{autoencoder_kl_forward.1} parent=11 // pred_check
        %p322 = pneg %p190
      $region30: #{autoencoder_kl_forward.1} parent=11 // pred_check_branch
        %324 = sbr.rel (%p322) target = $region32
      $region31: #{autoencoder_kl_forward.1} parent=11 // pred_region
        _
      $region32: #{autoencoder_kl_forward.1} parent=11 // pred_fallthru
        _
      // Predicated region
      $region33: #{autoencoder_kl_forward.1} parent=11 // pred_check
        %p325 = pneg %p211
      $region34: #{autoencoder_kl_forward.1} parent=11 // pred_check_branch
        %327 = sbr.rel (%p325) target = $region36
      $region35: #{autoencoder_kl_forward.1} parent=11 // pred_region
        _
      $region36: #{autoencoder_kl_forward.1} parent=11 // pred_fallthru
        _
    $region12: #{autoencoder_kl_forward.1} parent=5 // pred_fallthru
      _
    %p328 = scmp.lt.s32.totalorder %s17, 2
    // Predicated region
    $region37: #{autoencoder_kl_forward.1} parent=5 // pred_check
      %p329 = pneg %p328
    $region38: #{autoencoder_kl_forward.1} parent=5 // pred_check_branch
      %331 = sbr.rel (%p329) target = $region40
    $region39: #{autoencoder_kl_forward.1} parent=5 // pred_region
      // Predicated region
      $region41: #{autoencoder_kl_forward.1} parent=39 // pred_check
        %p332 = pneg %p51
      $region42: #{autoencoder_kl_forward.1} parent=39 // pred_check_branch
        %334 = sbr.rel (%p332) target = $region44
      $region43: #{autoencoder_kl_forward.1} parent=39 // pred_region
        %s335 = smul.u32 8, %s25
        %p336 = scmp.lt.s32.totalorder %s24, 1
        %s337 = scalar_select %p336, %s24, 1
        %p338 = scmp.lt.s32.totalorder %s335, 7
        %s339 = scalar_select %p338, %s335, 7
        %s340 = smul.addr %s337, 8
        %s341 = sadd.s32 %s339, %s340
        %s342 = smul.addr %s341, 4
        %s343 = scalar_lea.vmem %s0, %s342
        %s344 = smul.u32 8, %s25
      $region44: #{autoencoder_kl_forward.1} parent=39 // pred_fallthru
        _
      // Predicated region
      $region45: #{autoencoder_kl_forward.1} parent=39 // pred_check
        %p345 = pneg %p79
      $region46: #{autoencoder_kl_forward.1} parent=39 // pred_check_branch
        %347 = sbr.rel (%p345) target = $region48
      $region47: #{autoencoder_kl_forward.1} parent=39 // pred_region
        %s348 = smul.u32 8, %s25
        %p349 = scmp.lt.s32.totalorder %s24, 1
        %s350 = scalar_select %p349, %s24, 1
        %p351 = scmp.lt.s32.totalorder %s348, 7
        %s352 = scalar_select %p351, %s348, 7
        %s353 = smul.addr %s350, 8
        %s354 = sadd.s32 %s352, %s353
        %s355 = smul.addr %s354, 2
        %s356 = scalar_lea.vmem %s1, %s355
        %s357 = smul.u32 8, %s25
      $region48: #{autoencoder_kl_forward.1} parent=39 // pred_fallthru
        _
    $region40: #{autoencoder_kl_forward.1} parent=5 // pred_fallthru
      _
    %p358 = scmp.le.s32.totalorder 1, %s17
    %p359 = scmp.lt.s32.totalorder %s17, 3
    %p360 = pnand %p358, %p359
    %p361 = pneg %p360
    // Predicated region
    $region49: #{autoencoder_kl_forward.1} parent=5 // pred_check
      _
    $region50: #{autoencoder_kl_forward.1} parent=5 // pred_check_branch
      %363 = sbr.rel (%p360) target = $region52
    $region51: #{autoencoder_kl_forward.1} parent=5 // pred_region
      %s364 = ssub.s32 %s17, 1
      %s365 = smul.u32 8, %s27
      %p366 = scmp.lt.s32.totalorder %s26, 1
      %s367 = scalar_select %p366, %s26, 1
      %p368 = scmp.lt.s32.totalorder %s365, 7
      %s369 = scalar_select %p368, %s365, 7
      %s370 = smul.addr %s367, 8
      %s371 = sadd.s32 %s369, %s370
      %s372 = smul.addr %s371, 4
      %s373 = scalar_lea.vmem %s0, %s372
      %p374 = pneg %p57
      %p375 = pneg %p54
      %s376 = smul.u32 8, %s27
      %p377 = scmp.lt.s32.totalorder %s26, 1
      %s378 = scalar_select %p377, %s26, 1
      %p379 = scmp.lt.s32.totalorder %s376, 7
      %s380 = scalar_select %p379, %s376, 7
      %s381 = smul.addr %s378, 8
      %s382 = sadd.s32 %s380, %s381
      %s383 = smul.addr %s382, 2
      %s384 = scalar_lea.vmem %s1, %s383
      %p385 = pneg %p85
      %p386 = pneg %p82
      %p387 = pneg %p106
      %p388 = pneg %p103
      %p389 = pneg %p127
      %p390 = pneg %p124
      %p391 = pneg %p148
      %p392 = pneg %p145
      %p393 = pneg %p169
      %p394 = pneg %p166
      %p395 = pneg %p190
      %p396 = pneg %p187
      %p397 = pneg %p211
      %p398 = pneg %p208
      %p399 = pneg %p239
      %p400 = pneg %p236
      %s401 = smul.u32 8, %s27
      %p402 = scmp.lt.s32.totalorder %s26, 1
      %s403 = scalar_select %p402, %s26, 1
      %p404 = scmp.lt.s32.totalorder %s401, 7
      %s405 = scalar_select %p404, %s401, 7
      %s406 = smul.addr %s403, 8
      %s407 = sadd.s32 %s405, %s406
      %s408 = smul.addr %s407, 2
      %s409 = scalar_lea.vmem %s8, %s408
      %p410 = pneg %p267
      %p411 = pneg %p264
      %s412 = smul.u32 8, %s27
      %p413 = scmp.lt.s32.totalorder %s26, 1
      %s414 = scalar_select %p413, %s26, 1
      %p415 = scmp.lt.s32.totalorder %s412, 7
      %s416 = scalar_select %p415, %s412, 7
      %s417 = smul.addr %s414, 8
      %s418 = sadd.s32 %s416, %s417
      %s419 = smul.addr %s418, 2
      %s420 = scalar_lea.vmem %s9, %s419
      %p421 = pneg %p295
      %p422 = pneg %p292
      %s423 = smul.u32 8, %s27
      %p424 = scmp.lt.s32.totalorder %s26, 1
      %s425 = scalar_select %p424, %s26, 1
      %p426 = scmp.lt.s32.totalorder %s423, 7
      %s427 = scalar_select %p426, %s423, 7
      %s428 = smul.addr %s425, 8
      %s429 = sadd.s32 %s427, %s428
      %s430 = smul.addr %s429, 2
      %s431 = scalar_lea.vmem %s10, %s430
      %s432 = smul.u32 8, %s27
      %p433 = scmp.lt.s32.totalorder %s26, 1
      %s434 = scalar_select %p433, %s26, 1
      %p435 = scmp.lt.s32.totalorder %s432, 7
      %s436 = scalar_select %p435, %s432, 7
      %s437 = smul.addr %s434, 8
      %s438 = sadd.s32 %s436, %s437
      %s439 = smul.addr %s438, 4
      %s440 = scalar_lea.vmem %s0, %s439
      %s441 = smul.u32 8, %s27
      %s442 = smul.u32 8, %s27
      %p443 = scmp.lt.s32.totalorder %s26, 1
      %s444 = scalar_select %p443, %s26, 1
      %p445 = scmp.lt.s32.totalorder %s442, 7
      %s446 = scalar_select %p445, %s442, 7
      %s447 = smul.addr %s444, 8
      %s448 = sadd.s32 %s446, %s447
      %s449 = smul.addr %s448, 2
      %s450 = scalar_lea.vmem %s1, %s449
      %s451 = smul.u32 8, %s27
      %s452 = smul.u32 8, %s27
      %p453 = scmp.lt.s32.totalorder %s26, 1
      %s454 = scalar_select %p453, %s26, 1
      %p455 = scmp.lt.s32.totalorder %s452, 7
      %s456 = scalar_select %p455, %s452, 7
      %s457 = smul.addr %s454, 8
      %s458 = sadd.s32 %s456, %s457
      %s459 = smul.addr %s458, 2
      %s460 = scalar_lea.vmem %s8, %s459
      %s461 = smul.u32 8, %s27
      %s462 = smul.u32 8, %s27
      %p463 = scmp.lt.s32.totalorder %s26, 1
      %s464 = scalar_select %p463, %s26, 1
      %p465 = scmp.lt.s32.totalorder %s462, 7
      %s466 = scalar_select %p465, %s462, 7
      %s467 = smul.addr %s464, 8
      %s468 = sadd.s32 %s466, %s467
      %s469 = smul.addr %s468, 2
      %s470 = scalar_lea.vmem %s9, %s469
      %s471 = smul.u32 8, %s27
      %s472 = smul.u32 8, %s27
      %p473 = scmp.lt.s32.totalorder %s26, 1
      %s474 = scalar_select %p473, %s26, 1
      %p475 = scmp.lt.s32.totalorder %s472, 7
      %s476 = scalar_select %p475, %s472, 7
      %s477 = smul.addr %s474, 8
      %s478 = sadd.s32 %s476, %s477
      %s479 = smul.addr %s478, 2
      %s480 = scalar_lea.vmem %s10, %s479
      %s481 = smul.u32 8, %s27
      %v482 = vld [vmem:[%s440] sm:$0xff]
      %v483 = vld [vmem:[%s440 + $0x8] sm:$0xff]
      %v484 = vld [vmem:[%s440 + $0x10] sm:$0xff]
      %v485 = vld [vmem:[%s440 + $0x18] sm:$0xff]
      %v486 = vunpack.c.l.bf16 %v482
      %v487 = vunpack.c.h.bf16 %v482
      %v488 = vunpack.c.l.bf16 %v483
      %v489 = vunpack.c.h.bf16 %v483
      %v490 = vunpack.c.l.bf16 %v484
      %v491 = vunpack.c.h.bf16 %v484
      %v492 = vunpack.c.l.bf16 %v485
      %v493 = vunpack.c.h.bf16 %v485
      %v494 = vld [vmem:[%s2] sm:$0xf]
      %v495 = vld [vmem:[%s3] sm:$0xf]
      %497 = vset.pattern.permute.xlu0 0
      %498 = vperm.xlu0 %497, %v495
      %v499 = vpop.permute.xlu0 %498
      %vm501 = vcmask 64512
      %v503 = vsel %vm501, %v494, 0
      %505 = vmatprep.subr.mxu0 %v487
      %506 = vmatpush1.msra.mxu0 %v486
      %507 = vmatprep.subr.mxu0 0.0
      %508 = vmatpush1.msra.mxu0 0.0
      %509 = vmatprep.subr.mxu0 0.0
      %510 = vmatpush1.msra.mxu0 0.0
      %511 = vmatprep.subr.mxu0 0.0
      %512 = vmatpush1.msra.mxu0 0.0
      %513 = vmatprep.subr.mxu0 0.0
      %514 = vmatpush1.msra.mxu0 0.0
      %515 = vmatprep.subr.mxu0 0.0
      %516 = vmatpush1.msra.mxu0 0.0
      %517 = vmatprep.subr.mxu0 0.0
      %518 = vmatpush1.msra.mxu0 0.0
      %519 = vmatprep.subr.mxu0 0.0
      %520 = vmatpush1.msra.mxu0 0.0
      %521 = vmatprep.subr.mxu0 0.0
      %522 = vmatpush1.msra.mxu0 0.0
      %523 = vmatprep.subr.mxu0 0.0
      %524 = vmatpush1.msra.mxu0 0.0
      %525 = vmatprep.subr.mxu0 0.0
      %526 = vmatpush1.msra.mxu0 0.0
      %527 = vmatprep.subr.mxu0 0.0
      %528 = vmatpush1.msra.mxu0 0.0
      %529 = vmatprep.subr.mxu0 0.0
      %530 = vmatpush1.msra.mxu0 0.0
      %531 = vmatprep.subr.mxu0 0.0
      %532 = vmatpush1.msra.mxu0 0.0
      %533 = vmatprep.subr.mxu0 0.0
      %534 = vmatpush1.msra.mxu0 0.0
      %535 = vmatprep.subr.mxu0 0.0
      %536 = vmatpush1.msra.mxu0 0.0
      %537 = vmatprep.subr.mxu0 0.0
      %538 = vmatpush1.msra.mxu0 0.0
      %539 = vmatprep.subr.mxu0 0.0
      %540 = vmatpush1.msra.mxu0 0.0
      %541 = vmatprep.subr.mxu0 0.0
      %542 = vmatpush1.msra.mxu0 0.0
      %543 = vmatprep.subr.mxu0 0.0
      %544 = vmatpush1.msra.mxu0 0.0
      %545 = vmatprep.subr.mxu0 0.0
      %546 = vmatpush1.msra.mxu0 0.0
      %547 = vmatprep.subr.mxu0 0.0
      %548 = vmatpush1.msra.mxu0 0.0
      %549 = vmatprep.subr.mxu0 0.0
      %550 = vmatpush1.msra.mxu0 0.0
      %551 = vmatprep.subr.mxu0 0.0
      %552 = vmatpush1.msra.mxu0 0.0
      %553 = vmatprep.subr.mxu0 0.0
      %554 = vmatpush1.msra.mxu0 0.0
      %555 = vmatprep.subr.mxu0 0.0
      %556 = vmatpush1.msra.mxu0 0.0
      %557 = vmatprep.subr.mxu0 0.0
      %558 = vmatpush1.msra.mxu0 0.0
      %559 = vmatprep.subr.mxu0 0.0
      %560 = vmatpush1.msra.mxu0 0.0
      %561 = vmatprep.subr.mxu0 0.0
      %562 = vmatpush1.msra.mxu0 0.0
      %563 = vmatprep.subr.mxu0 0.0
      %564 = vmatpush1.msra.mxu0 0.0
      %565 = vmatprep.subr.mxu0 0.0
      %566 = vmatpush1.msra.mxu0 0.0
      %567 = vmatprep.subr.mxu0 0.0
      %568 = vmatpush1.msra.mxu0 0.0
      %569 = vmatprep.mubr.f32.mxu0 0.0
      %570 = vmatmul.mubr.f32.gmra.mrb[0].mxu0 %v503
      %v571 = vpop.f32.mrb[0].mxu0
      %v572 = vadd.f32 %v499, %v571
      %v573 = vpop.f32.mrb[0].mxu0
      %v574 = vadd.f32 %v499, %v573
      %575 = vdwg.mxu0
      %576 = vmatprep.subr.mxu0 %v489
      %577 = vmatpush1.msra.mxu0 %v488
      %578 = vmatprep.subr.mxu0 0.0
      %579 = vmatpush1.msra.mxu0 0.0
      %580 = vmatprep.subr.mxu0 0.0
      %581 = vmatpush1.msra.mxu0 0.0
      %582 = vmatprep.subr.mxu0 0.0
      %583 = vmatpush1.msra.mxu0 0.0
      %584 = vmatprep.subr.mxu0 0.0
      %585 = vmatpush1.msra.mxu0 0.0
      %586 = vmatprep.subr.mxu0 0.0
      %587 = vmatpush1.msra.mxu0 0.0
      %588 = vmatprep.subr.mxu0 0.0
      %589 = vmatpush1.msra.mxu0 0.0
      %590 = vmatprep.subr.mxu0 0.0
      %591 = vmatpush1.msra.mxu0 0.0
      %592 = vmatprep.subr.mxu0 0.0
      %593 = vmatpush1.msra.mxu0 0.0
      %594 = vmatprep.subr.mxu0 0.0
      %595 = vmatpush1.msra.mxu0 0.0
      %596 = vmatprep.subr.mxu0 0.0
      %597 = vmatpush1.msra.mxu0 0.0
      %598 = vmatprep.subr.mxu0 0.0
      %599 = vmatpush1.msra.mxu0 0.0
      %600 = vmatprep.subr.mxu0 0.0
      %601 = vmatpush1.msra.mxu0 0.0
      %602 = vmatprep.subr.mxu0 0.0
      %603 = vmatpush1.msra.mxu0 0.0
      %604 = vmatprep.subr.mxu0 0.0
      %605 = vmatpush1.msra.mxu0 0.0
      %606 = vmatprep.subr.mxu0 0.0
      %607 = vmatpush1.msra.mxu0 0.0
      %608 = vmatprep.subr.mxu0 0.0
      %609 = vmatpush1.msra.mxu0 0.0
      %610 = vmatprep.subr.mxu0 0.0
      %611 = vmatpush1.msra.mxu0 0.0
      %612 = vmatprep.subr.mxu0 0.0
      %613 = vmatpush1.msra.mxu0 0.0
      %614 = vmatprep.subr.mxu0 0.0
      %615 = vmatpush1.msra.mxu0 0.0
      %616 = vmatprep.subr.mxu0 0.0
      %617 = vmatpush1.msra.mxu0 0.0
      %618 = vmatprep.subr.mxu0 0.0
      %619 = vmatpush1.msra.mxu0 0.0
      %620 = vmatprep.subr.mxu0 0.0
      %621 = vmatpush1.msra.mxu0 0.0
      %622 = vmatprep.subr.mxu0 0.0
      %623 = vmatpush1.msra.mxu0 0.0
      %624 = vmatprep.subr.mxu0 0.0
      %625 = vmatpush1.msra.mxu0 0.0
      %626 = vmatprep.subr.mxu0 0.0
      %627 = vmatpush1.msra.mxu0 0.0
      %628 = vmatprep.subr.mxu0 0.0
      %629 = vmatpush1.msra.mxu0 0.0
      %630 = vmatprep.subr.mxu0 0.0
      %631 = vmatpush1.msra.mxu0 0.0
      %632 = vmatprep.subr.mxu0 0.0
      %633 = vmatpush1.msra.mxu0 0.0
      %634 = vmatprep.subr.mxu0 0.0
      %635 = vmatpush1.msra.mxu0 0.0
      %636 = vmatprep.subr.mxu0 0.0
      %637 = vmatpush1.msra.mxu0 0.0
      %638 = vmatprep.subr.mxu0 0.0
      %639 = vmatpush1.msra.mxu0 0.0
      %640 = vmatprep.mubr.f32.mxu0 0.0
      %641 = vmatmul.mubr.f32.gmra.mrb[0].mxu0 %v503
      %v642 = vpop.f32.mrb[0].mxu0
      %v643 = vadd.f32 %v499, %v642
      %v644 = vpop.f32.mrb[0].mxu0
      %v645 = vadd.f32 %v499, %v644
      %646 = vdwg.mxu0
      %647 = vmatprep.subr.mxu0 %v491
      %648 = vmatpush1.msra.mxu0 %v490
      %649 = vmatprep.subr.mxu0 0.0
      %650 = vmatpush1.msra.mxu0 0.0
      %651 = vmatprep.subr.mxu0 0.0
      %652 = vmatpush1.msra.mxu0 0.0
      %653 = vmatprep.subr.mxu0 0.0
      %654 = vmatpush1.msra.mxu0 0.0
      %655 = vmatprep.subr.mxu0 0.0
      %656 = vmatpush1.msra.mxu0 0.0
      %657 = vmatprep.subr.mxu0 0.0
      %658 = vmatpush1.msra.mxu0 0.0
      %659 = vmatprep.subr.mxu0 0.0
      %660 = vmatpush1.msra.mxu0 0.0
      %661 = vmatprep.subr.mxu0 0.0
      %662 = vmatpush1.msra.mxu0 0.0
      %663 = vmatprep.subr.mxu0 0.0
      %664 = vmatpush1.msra.mxu0 0.0
      %665 = vmatprep.subr.mxu0 0.0
      %666 = vmatpush1.msra.mxu0 0.0
      %667 = vmatprep.subr.mxu0 0.0
      %668 = vmatpush1.msra.mxu0 0.0
      %669 = vmatprep.subr.mxu0 0.0
      %670 = vmatpush1.msra.mxu0 0.0
      %671 = vmatprep.subr.mxu0 0.0
      %672 = vmatpush1.msra.mxu0 0.0
      %673 = vmatprep.subr.mxu0 0.0
      %674 = vmatpush1.msra.mxu0 0.0
      %675 = vmatprep.subr.mxu0 0.0
      %676 = vmatpush1.msra.mxu0 0.0
      %677 = vmatprep.subr.mxu0 0.0
      %678 = vmatpush1.msra.mxu0 0.0
      %679 = vmatprep.subr.mxu0 0.0
      %680 = vmatpush1.msra.mxu0 0.0
      %681 = vmatprep.subr.mxu0 0.0
      %682 = vmatpush1.msra.mxu0 0.0
      %683 = vmatprep.subr.mxu0 0.0
      %684 = vmatpush1.msra.mxu0 0.0
      %685 = vmatprep.subr.mxu0 0.0
      %686 = vmatpush1.msra.mxu0 0.0
      %687 = vmatprep.subr.mxu0 0.0
      %688 = vmatpush1.msra.mxu0 0.0
      %689 = vmatprep.subr.mxu0 0.0
      %690 = vmatpush1.msra.mxu0 0.0
      %691 = vmatprep.subr.mxu0 0.0
      %692 = vmatpush1.msra.mxu0 0.0
      %693 = vmatprep.subr.mxu0 0.0
      %694 = vmatpush1.msra.mxu0 0.0
      %695 = vmatprep.subr.mxu0 0.0
      %696 = vmatpush1.msra.mxu0 0.0
      %697 = vmatprep.subr.mxu0 0.0
      %698 = vmatpush1.msra.mxu0 0.0
      %699 = vmatprep.subr.mxu0 0.0
      %700 = vmatpush1.msra.mxu0 0.0
      %701 = vmatprep.subr.mxu0 0.0
      %702 = vmatpush1.msra.mxu0 0.0
      %703 = vmatprep.subr.mxu0 0.0
      %704 = vmatpush1.msra.mxu0 0.0
      %705 = vmatprep.subr.mxu0 0.0
      %706 = vmatpush1.msra.mxu0 0.0
      %707 = vmatprep.subr.mxu0 0.0
      %708 = vmatpush1.msra.mxu0 0.0
      %709 = vmatprep.subr.mxu0 0.0
      %710 = vmatpush1.msra.mxu0 0.0
      %711 = vmatprep.mubr.f32.mxu0 0.0
      %712 = vmatmul.mubr.f32.gmra.mrb[0].mxu0 %v503
      %v713 = vpop.f32.mrb[0].mxu0
      %v714 = vadd.f32 %v499, %v713
      %v715 = vpop.f32.mrb[0].mxu0
      %v716 = vadd.f32 %v499, %v715
      %717 = vdwg.mxu0
      %718 = vmatprep.subr.mxu0 %v493
      %719 = vmatpush1.msra.mxu0 %v492
      %720 = vmatprep.subr.mxu0 0.0
      %721 = vmatpush1.msra.mxu0 0.0
      %722 = vmatprep.subr.mxu0 0.0
      %723 = vmatpush1.msra.mxu0 0.0
      %724 = vmatprep.subr.mxu0 0.0
      %725 = vmatpush1.msra.mxu0 0.0
      %726 = vmatprep.subr.mxu0 0.0
      %727 = vmatpush1.msra.mxu0 0.0
      %728 = vmatprep.subr.mxu0 0.0
      %729 = vmatpush1.msra.mxu0 0.0
      %730 = vmatprep.subr.mxu0 0.0
      %731 = vmatpush1.msra.mxu0 0.0
      %732 = vmatprep.subr.mxu0 0.0
      %733 = vmatpush1.msra.mxu0 0.0
      %734 = vmatprep.subr.mxu0 0.0
      %735 = vmatpush1.msra.mxu0 0.0
      %736 = vmatprep.subr.mxu0 0.0
      %737 = vmatpush1.msra.mxu0 0.0
      %738 = vmatprep.subr.mxu0 0.0
      %739 = vmatpush1.msra.mxu0 0.0
      %740 = vmatprep.subr.mxu0 0.0
      %741 = vmatpush1.msra.mxu0 0.0
      %742 = vmatprep.subr.mxu0 0.0
      %743 = vmatpush1.msra.mxu0 0.0
      %744 = vmatprep.subr.mxu0 0.0
      %745 = vmatpush1.msra.mxu0 0.0
      %746 = vmatprep.subr.mxu0 0.0
      %747 = vmatpush1.msra.mxu0 0.0
      %748 = vmatprep.subr.mxu0 0.0
      %749 = vmatpush1.msra.mxu0 0.0
      %750 = vmatprep.subr.mxu0 0.0
      %751 = vmatpush1.msra.mxu0 0.0
      %752 = vmatprep.subr.mxu0 0.0
      %753 = vmatpush1.msra.mxu0 0.0
      %754 = vmatprep.subr.mxu0 0.0
      %755 = vmatpush1.msra.mxu0 0.0
      %756 = vmatprep.subr.mxu0 0.0
      %757 = vmatpush1.msra.mxu0 0.0
      %758 = vmatprep.subr.mxu0 0.0
      %759 = vmatpush1.msra.mxu0 0.0
      %760 = vmatprep.subr.mxu0 0.0
      %761 = vmatpush1.msra.mxu0 0.0
      %762 = vmatprep.subr.mxu0 0.0
      %763 = vmatpush1.msra.mxu0 0.0
      %764 = vmatprep.subr.mxu0 0.0
      %765 = vmatpush1.msra.mxu0 0.0
      %766 = vmatprep.subr.mxu0 0.0
      %767 = vmatpush1.msra.mxu0 0.0
      %768 = vmatprep.subr.mxu0 0.0
      %769 = vmatpush1.msra.mxu0 0.0
      %770 = vmatprep.subr.mxu0 0.0
      %771 = vmatpush1.msra.mxu0 0.0
      %772 = vmatprep.subr.mxu0 0.0
      %773 = vmatpush1.msra.mxu0 0.0
      %774 = vmatprep.subr.mxu0 0.0
      %775 = vmatpush1.msra.mxu0 0.0
      %776 = vmatprep.subr.mxu0 0.0
      %777 = vmatpush1.msra.mxu0 0.0
      %778 = vmatprep.subr.mxu0 0.0
      %779 = vmatpush1.msra.mxu0 0.0
      %780 = vmatprep.subr.mxu0 0.0
      %781 = vmatpush1.msra.mxu0 0.0
      %782 = vmatprep.mubr.f32.mxu0 0.0
      %783 = vmatmul.mubr.f32.gmra.mrb[0].mxu0 %v503
      %v784 = vpop.f32.mrb[0].mxu0
      %v785 = vadd.f32 %v499, %v784
      %v786 = vpop.f32.mrb[0].mxu0
      %v787 = vadd.f32 %v499, %v786
      %788 = vdwg.mxu0
      %v789 = vld [vmem:[%s4] sm:$0xf]
      %v790 = vld [vmem:[%s5] sm:$0xf]
      %792 = vset.pattern.permute.xlu0 0
      %793 = vperm.xlu0 %792, %v790
      %v794 = vpop.permute.xlu0 %793
      %v797 = vsel %vm501, %v789, 0
      %799 = vmatprep.subr.mxu0 %v487
      %800 = vmatpush1.msra.mxu0 %v486
      %801 = vmatprep.subr.mxu0 0.0
      %802 = vmatpush1.msra.mxu0 0.0
      %803 = vmatprep.subr.mxu0 0.0
      %804 = vmatpush1.msra.mxu0 0.0
      %805 = vmatprep.subr.mxu0 0.0
      %806 = vmatpush1.msra.mxu0 0.0
      %807 = vmatprep.subr.mxu0 0.0
      %808 = vmatpush1.msra.mxu0 0.0
      %809 = vmatprep.subr.mxu0 0.0
      %810 = vmatpush1.msra.mxu0 0.0
      %811 = vmatprep.subr.mxu0 0.0
      %812 = vmatpush1.msra.mxu0 0.0
      %813 = vmatprep.subr.mxu0 0.0
      %814 = vmatpush1.msra.mxu0 0.0
      %815 = vmatprep.subr.mxu0 0.0
      %816 = vmatpush1.msra.mxu0 0.0
      %817 = vmatprep.subr.mxu0 0.0
      %818 = vmatpush1.msra.mxu0 0.0
      %819 = vmatprep.subr.mxu0 0.0
      %820 = vmatpush1.msra.mxu0 0.0
      %821 = vmatprep.subr.mxu0 0.0
      %822 = vmatpush1.msra.mxu0 0.0
      %823 = vmatprep.subr.mxu0 0.0
      %824 = vmatpush1.msra.mxu0 0.0
      %825 = vmatprep.subr.mxu0 0.0
      %826 = vmatpush1.msra.mxu0 0.0
      %827 = vmatprep.subr.mxu0 0.0
      %828 = vmatpush1.msra.mxu0 0.0
      %829 = vmatprep.subr.mxu0 0.0
      %830 = vmatpush1.msra.mxu0 0.0
      %831 = vmatprep.subr.mxu0 0.0
      %832 = vmatpush1.msra.mxu0 0.0
      %833 = vmatprep.subr.mxu0 0.0
      %834 = vmatpush1.msra.mxu0 0.0
      %835 = vmatprep.subr.mxu0 0.0
      %836 = vmatpush1.msra.mxu0 0.0
      %837 = vmatprep.subr.mxu0 0.0
      %838 = vmatpush1.msra.mxu0 0.0
      %839 = vmatprep.subr.mxu0 0.0
      %840 = vmatpush1.msra.mxu0 0.0
      %841 = vmatprep.subr.mxu0 0.0
      %842 = vmatpush1.msra.mxu0 0.0
      %843 = vmatprep.subr.mxu0 0.0
      %844 = vmatpush1.msra.mxu0 0.0
      %845 = vmatprep.subr.mxu0 0.0
      %846 = vmatpush1.msra.mxu0 0.0
      %847 = vmatprep.subr.mxu0 0.0
      %848 = vmatpush1.msra.mxu0 0.0
      %849 = vmatprep.subr.mxu0 0.0
      %850 = vmatpush1.msra.mxu0 0.0
      %851 = vmatprep.subr.mxu0 0.0
      %852 = vmatpush1.msra.mxu0 0.0
      %853 = vmatprep.subr.mxu0 0.0
      %854 = vmatpush1.msra.mxu0 0.0
      %855 = vmatprep.subr.mxu0 0.0
      %856 = vmatpush1.msra.mxu0 0.0
      %857 = vmatprep.subr.mxu0 0.0
      %858 = vmatpush1.msra.mxu0 0.0
      %859 = vmatprep.subr.mxu0 0.0
      %860 = vmatpush1.msra.mxu0 0.0
      %861 = vmatprep.subr.mxu0 0.0
      %862 = vmatpush1.msra.mxu0 0.0
      %863 = vmatprep.mubr.f32.mxu0 0.0
      %864 = vmatmul.mubr.f32.gmra.mrb[0].mxu0 %v797
      %v865 = vpop.f32.mrb[0].mxu0
      %v866 = vadd.f32 %v794, %v865
      %v867 = vpop.f32.mrb[0].mxu0
      %v868 = vadd.f32 %v794, %v867
      %869 = vdwg.mxu0
      %870 = vmatprep.subr.mxu0 %v489
      %871 = vmatpush1.msra.mxu0 %v488
      %872 = vmatprep.subr.mxu0 0.0
      %873 = vmatpush1.msra.mxu0 0.0
      %874 = vmatprep.subr.mxu0 0.0
      %875 = vmatpush1.msra.mxu0 0.0
      %876 = vmatprep.subr.mxu0 0.0
      %877 = vmatpush1.msra.mxu0 0.0
      %878 = vmatprep.subr.mxu0 0.0
      %879 = vmatpush1.msra.mxu0 0.0
      %880 = vmatprep.subr.mxu0 0.0
      %881 = vmatpush1.msra.mxu0 0.0
      %882 = vmatprep.subr.mxu0 0.0
      %883 = vmatpush1.msra.mxu0 0.0
      %884 = vmatprep.subr.mxu0 0.0
      %885 = vmatpush1.msra.mxu0 0.0
      %886 = vmatprep.subr.mxu0 0.0
      %887 = vmatpush1.msra.mxu0 0.0
      %888 = vmatprep.subr.mxu0 0.0
      %889 = vmatpush1.msra.mxu0 0.0
      %890 = vmatprep.subr.mxu0 0.0
      %891 = vmatpush1.msra.mxu0 0.0
      %892 = vmatprep.subr.mxu0 0.0
      %893 = vmatpush1.msra.mxu0 0.0
      %894 = vmatprep.subr.mxu0 0.0
      %895 = vmatpush1.msra.mxu0 0.0
      %896 = vmatprep.subr.mxu0 0.0
      %897 = vmatpush1.msra.mxu0 0.0
      %898 = vmatprep.subr.mxu0 0.0
      %899 = vmatpush1.msra.mxu0 0.0
      %900 = vmatprep.subr.mxu0 0.0
      %901 = vmatpush1.msra.mxu0 0.0
      %902 = vmatprep.subr.mxu0 0.0
      %903 = vmatpush1.msra.mxu0 0.0
      %904 = vmatprep.subr.mxu0 0.0
      %905 = vmatpush1.msra.mxu0 0.0
      %906 = vmatprep.subr.mxu0 0.0
      %907 = vmatpush1.msra.mxu0 0.0
      %908 = vmatprep.subr.mxu0 0.0
      %909 = vmatpush1.msra.mxu0 0.0
      %910 = vmatprep.subr.mxu0 0.0
      %911 = vmatpush1.msra.mxu0 0.0
      %912 = vmatprep.subr.mxu0 0.0
      %913 = vmatpush1.msra.mxu0 0.0
      %914 = vmatprep.subr.mxu0 0.0
      %915 = vmatpush1.msra.mxu0 0.0
      %916 = vmatprep.subr.mxu0 0.0
      %917 = vmatpush1.msra.mxu0 0.0
      %918 = vmatprep.subr.mxu0 0.0
      %919 = vmatpush1.msra.mxu0 0.0
      %920 = vmatprep.subr.mxu0 0.0
      %921 = vmatpush1.msra.mxu0 0.0
      %922 = vmatprep.subr.mxu0 0.0
      %923 = vmatpush1.msra.mxu0 0.0
      %924 = vmatprep.subr.mxu0 0.0
      %925 = vmatpush1.msra.mxu0 0.0
      %926 = vmatprep.subr.mxu0 0.0
      %927 = vmatpush1.msra.mxu0 0.0
      %928 = vmatprep.subr.mxu0 0.0
      %929 = vmatpush1.msra.mxu0 0.0
      %930 = vmatprep.subr.mxu0 0.0
      %931 = vmatpush1.msra.mxu0 0.0
      %932 = vmatprep.subr.mxu0 0.0
      %933 = vmatpush1.msra.mxu0 0.0
      %934 = vmatprep.mubr.f32.mxu0 0.0
      %935 = vmatmul.mubr.f32.gmra.mrb[0].mxu0 %v797
      %v936 = vpop.f32.mrb[0].mxu0
      %v937 = vadd.f32 %v794, %v936
      %v938 = vpop.f32.mrb[0].mxu0
      %v939 = vadd.f32 %v794, %v938
      %940 = vdwg.mxu0
      %941 = vmatprep.subr.mxu0 %v491
      %942 = vmatpush1.msra.mxu0 %v490
      %943 = vmatprep.subr.mxu0 0.0
      %944 = vmatpush1.msra.mxu0 0.0
      %945 = vmatprep.subr.mxu0 0.0
      %946 = vmatpush1.msra.mxu0 0.0
      %947 = vmatprep.subr.mxu0 0.0
      %948 = vmatpush1.msra.mxu0 0.0
      %949 = vmatprep.subr.mxu0 0.0
      %950 = vmatpush1.msra.mxu0 0.0
      %951 = vmatprep.subr.mxu0 0.0
      %952 = vmatpush1.msra.mxu0 0.0
      %953 = vmatprep.subr.mxu0 0.0
      %954 = vmatpush1.msra.mxu0 0.0
      %955 = vmatprep.subr.mxu0 0.0
      %956 = vmatpush1.msra.mxu0 0.0
      %957 = vmatprep.subr.mxu0 0.0
      %958 = vmatpush1.msra.mxu0 0.0
      %959 = vmatprep.subr.mxu0 0.0
      %960 = vmatpush1.msra.mxu0 0.0
      %961 = vmatprep.subr.mxu0 0.0
      %962 = vmatpush1.msra.mxu0 0.0
      %963 = vmatprep.subr.mxu0 0.0
      %964 = vmatpush1.msra.mxu0 0.0
      %965 = vmatprep.subr.mxu0 0.0
      %966 = vmatpush1.msra.mxu0 0.0
      %967 = vmatprep.subr.mxu0 0.0
      %968 = vmatpush1.msra.mxu0 0.0
      %969 = vmatprep.subr.mxu0 0.0
      %970 = vmatpush1.msra.mxu0 0.0
      %971 = vmatprep.subr.mxu0 0.0
      %972 = vmatpush1.msra.mxu0 0.0
      %973 = vmatprep.subr.mxu0 0.0
      %974 = vmatpush1.msra.mxu0 0.0
      %975 = vmatprep.subr.mxu0 0.0
      %976 = vmatpush1.msra.mxu0 0.0
      %977 = vmatprep.subr.mxu0 0.0
      %978 = vmatpush1.msra.mxu0 0.0
      %979 = vmatprep.subr.mxu0 0.0
      %980 = vmatpush1.msra.mxu0 0.0
      %981 = vmatprep.subr.mxu0 0.0
      %982 = vmatpush1.msra.mxu0 0.0
      %983 = vmatprep.subr.mxu0 0.0
      %984 = vmatpush1.msra.mxu0 0.0
      %985 = vmatprep.subr.mxu0 0.0
      %986 = vmatpush1.msra.mxu0 0.0
      %987 = vmatprep.subr.mxu0 0.0
      %988 = vmatpush1.msra.mxu0 0.0
      %989 = vmatprep.subr.mxu0 0.0
      %990 = vmatpush1.msra.mxu0 0.0
      %991 = vmatprep.subr.mxu0 0.0
      %992 = vmatpush1.msra.mxu0 0.0
      %993 = vmatprep.subr.mxu0 0.0
      %994 = vmatpush1.msra.mxu0 0.0
      %995 = vmatprep.subr.mxu0 0.0
      %996 = vmatpush1.msra.mxu0 0.0
      %997 = vmatprep.subr.mxu0 0.0
      %998 = vmatpush1.msra.mxu0 0.0
      %999 = vmatprep.subr.mxu0 0.0
      %1000 = vmatpush1.msra.mxu0 0.0
      %1001 = vmatprep.subr.mxu0 0.0
      %1002 = vmatpush1.msra.mxu0 0.0
      %1003 = vmatprep.subr.mxu0 0.0
      %1004 = vmatpush1.msra.mxu0 0.0
      %1005 = vmatprep.mubr.f32.mxu0 0.0
      %1006 = vmatmul.mubr.f32.gmra.mrb[0].mxu0 %v797
      %v1007 = vpop.f32.mrb[0].mxu0
      %v1008 = vadd.f32 %v794, %v1007
      %v1009 = vpop.f32.mrb[0].mxu0
      %v1010 = vadd.f32 %v794, %v1009
      %1011 = vdwg.mxu0
      %1012 = vmatprep.subr.mxu0 %v493
      %1013 = vmatpush1.msra.mxu0 %v492
      %1014 = vmatprep.subr.mxu0 0.0
      %1015 = vmatpush1.msra.mxu0 0.0
      %1016 = vmatprep.subr.mxu0 0.0
      %1017 = vmatpush1.msra.mxu0 0.0
      %1018 = vmatprep.subr.mxu0 0.0
      %1019 = vmatpush1.msra.mxu0 0.0
      %1020 = vmatprep.subr.mxu0 0.0
      %1021 = vmatpush1.msra.mxu0 0.0
      %1022 = vmatprep.subr.mxu0 0.0
      %1023 = vmatpush1.msra.mxu0 0.0
      %1024 = vmatprep.subr.mxu0 0.0
      %1025 = vmatpush1.msra.mxu0 0.0
      %1026 = vmatprep.subr.mxu0 0.0
      %1027 = vmatpush1.msra.mxu0 0.0
      %1028 = vmatprep.subr.mxu0 0.0
      %1029 = vmatpush1.msra.mxu0 0.0
      %1030 = vmatprep.subr.mxu0 0.0
      %1031 = vmatpush1.msra.mxu0 0.0
      %1032 = vmatprep.subr.mxu0 0.0
      %1033 = vmatpush1.msra.mxu0 0.0
      %1034 = vmatprep.subr.mxu0 0.0
      %1035 = vmatpush1.msra.mxu0 0.0
      %1036 = vmatprep.subr.mxu0 0.0
      %1037 = vmatpush1.msra.mxu0 0.0
      %1038 = vmatprep.subr.mxu0 0.0
      %1039 = vmatpush1.msra.mxu0 0.0
      %1040 = vmatprep.subr.mxu0 0.0
      %1041 = vmatpush1.msra.mxu0 0.0
      %1042 = vmatprep.subr.mxu0 0.0
      %1043 = vmatpush1.msra.mxu0 0.0
      %1044 = vmatprep.subr.mxu0 0.0
      %1045 = vmatpush1.msra.mxu0 0.0
      %1046 = vmatprep.subr.mxu0 0.0
      %1047 = vmatpush1.msra.mxu0 0.0
      %1048 = vmatprep.subr.mxu0 0.0
      %1049 = vmatpush1.msra.mxu0 0.0
      %1050 = vmatprep.subr.mxu0 0.0
      %1051 = vmatpush1.msra.mxu0 0.0
      %1052 = vmatprep.subr.mxu0 0.0
      %1053 = vmatpush1.msra.mxu0 0.0
      %1054 = vmatprep.subr.mxu0 0.0
      %1055 = vmatpush1.msra.mxu0 0.0
      %1056 = vmatprep.subr.mxu0 0.0
      %1057 = vmatpush1.msra.mxu0 0.0
      %1058 = vmatprep.subr.mxu0 0.0
      %1059 = vmatpush1.msra.mxu0 0.0
      %1060 = vmatprep.subr.mxu0 0.0
      %1061 = vmatpush1.msra.mxu0 0.0
      %1062 = vmatprep.subr.mxu0 0.0
      %1063 = vmatpush1.msra.mxu0 0.0
      %1064 = vmatprep.subr.mxu0 0.0
      %1065 = vmatpush1.msra.mxu0 0.0
      %1066 = vmatprep.subr.mxu0 0.0
      %1067 = vmatpush1.msra.mxu0 0.0
      %1068 = vmatprep.subr.mxu0 0.0
      %1069 = vmatpush1.msra.mxu0 0.0
      %1070 = vmatprep.subr.mxu0 0.0
      %1071 = vmatpush1.msra.mxu0 0.0
      %1072 = vmatprep.subr.mxu0 0.0
      %1073 = vmatpush1.msra.mxu0 0.0
      %1074 = vmatprep.subr.mxu0 0.0
      %1075 = vmatpush1.msra.mxu0 0.0
      %1076 = vmatprep.mubr.f32.mxu0 0.0
      %1077 = vmatmul.mubr.f32.gmra.mrb[0].mxu0 %v797
      %v1078 = vpop.f32.mrb[0].mxu0
      %v1079 = vadd.f32 %v794, %v1078
      %v1080 = vpop.f32.mrb[0].mxu0
      %v1081 = vadd.f32 %v794, %v1080
      %1082 = vdwg.mxu0
      %v1083 = vmax.f32 %v866, -30.0
      %v1084 = vmax.f32 %v868, -30.0
      %v1085 = vmax.f32 %v937, -30.0
      %v1086 = vmax.f32 %v939, -30.0
      %v1087 = vmax.f32 %v1008, -30.0
      %v1088 = vmax.f32 %v1010, -30.0
      %v1089 = vmax.f32 %v1079, -30.0
      %v1090 = vmax.f32 %v1081, -30.0
      %v1091 = vmin.f32 %v1083, 20.0
      %v1092 = vmin.f32 %v1084, 20.0
      %v1093 = vmin.f32 %v1085, 20.0
      %v1094 = vmin.f32 %v1086, 20.0
      %v1095 = vmin.f32 %v1087, 20.0
      %v1096 = vmin.f32 %v1088, 20.0
      %v1097 = vmin.f32 %v1089, 20.0
      %v1098 = vmin.f32 %v1090, 20.0
      %v1099 = vld [vmem:[%s450] sm:$0xff]
      %v1100 = vld [vmem:[%s450 + $0x8] sm:$0xff]
      %v1101 = vunpack.c.l.bf16 %v1099
      %v1102 = vunpack.c.h.bf16 %v1099
      %v1103 = vunpack.c.l.bf16 %v1100
      %v1104 = vunpack.c.h.bf16 %v1100
      %v1105 = vmul.f32 %v1091, 0.5
      %v1106 = vmul.f32 %v1092, 0.5
      %v1107 = vmul.f32 %v1093, 0.5
      %v1108 = vmul.f32 %v1094, 0.5
      %v1109 = vmul.f32 %v1095, 0.5
      %v1110 = vmul.f32 %v1096, 0.5
      %v1111 = vmul.f32 %v1097, 0.5
      %v1112 = vmul.f32 %v1098, 0.5
      %v1113 = vmul.f32 %v1105, 1.442695
      %v1114 = vpow.pop %v1113
      %v1115 = vmul.f32 %v1106, 1.442695
      %v1116 = vpow.pop %v1115
      %v1117 = vmul.f32 %v1107, 1.442695
      %v1118 = vpow.pop %v1117
      %v1119 = vmul.f32 %v1108, 1.442695
      %v1120 = vpow.pop %v1119
      %v1121 = vmul.f32 %v1109, 1.442695
      %v1122 = vpow.pop %v1121
      %v1123 = vmul.f32 %v1110, 1.442695
      %v1124 = vpow.pop %v1123
      %v1125 = vmul.f32 %v1111, 1.442695
      %v1126 = vpow.pop %v1125
      %v1127 = vmul.f32 %v1112, 1.442695
      %v1128 = vpow.pop %v1127
      %v1133 = vcombine.high %v1101, %v1101
      %v1134 = vcombine.high %v1102, %v1102
      %v1135 = vcombine.high %v1103, %v1103
      %v1136 = vcombine.high %v1104, %v1104
      %v1141 = vmul.f32 %v1114, %v1101
      %v1142 = vmul.f32 %v1116, %v1133
      %v1143 = vmul.f32 %v1118, %v1102
      %v1144 = vmul.f32 %v1120, %v1134
      %v1145 = vmul.f32 %v1122, %v1103
      %v1146 = vmul.f32 %v1124, %v1135
      %v1147 = vmul.f32 %v1126, %v1104
      %v1148 = vmul.f32 %v1128, %v1136
      %v1149 = vadd.f32 %v572, %v1141
      %v1150 = vadd.f32 %v574, %v1142
      %v1151 = vadd.f32 %v643, %v1143
      %v1152 = vadd.f32 %v645, %v1144
      %v1153 = vadd.f32 %v714, %v1145
      %v1154 = vadd.f32 %v716, %v1146
      %v1155 = vadd.f32 %v785, %v1147
      %v1156 = vadd.f32 %v787, %v1148
      %v1157 = vld [vmem:[%s6] sm:$0xf]
      %v1158 = vld [vmem:[%s7] sm:$0xf]
      %1160 = vset.pattern.permute.xlu0 0
      %1161 = vperm.xlu0 %1160, %v1158
      %v1162 = vpop.permute.xlu0 %1161
      %vm1164 = vcmask 31744
      %v1166 = vsel %vm1164, %v1157, 0
      %vm1168 = vcmask 1043456
      %v1170 = vsel %vm1168, %v1149, 0
      %v1173 = vsel %vm1168, %v1150, 0
      %v1176 = vsel %vm1168, %v1151, 0
      %v1179 = vsel %vm1168, %v1152, 0
      %v1182 = vsel %vm1168, %v1153, 0
      %v1185 = vsel %vm1168, %v1154, 0
      %v1188 = vsel %vm1168, %v1155, 0
      %v1191 = vsel %vm1168, %v1156, 0
      %1193 = vmatprep.subr.mxu0 %v1173
      %1194 = vmatpush1.msra.mxu0 %v1170
      %1195 = vmatprep.subr.mxu0 0.0
      %1196 = vmatpush1.msra.mxu0 0.0
      %1197 = vmatprep.subr.mxu0 0.0
      %1198 = vmatpush1.msra.mxu0 0.0
      %1199 = vmatprep.subr.mxu0 0.0
      %1200 = vmatpush1.msra.mxu0 0.0
      %1201 = vmatprep.subr.mxu0 0.0
      %1202 = vmatpush1.msra.mxu0 0.0
      %1203 = vmatprep.subr.mxu0 0.0
      %1204 = vmatpush1.msra.mxu0 0.0
      %1205 = vmatprep.subr.mxu0 0.0
      %1206 = vmatpush1.msra.mxu0 0.0
      %1207 = vmatprep.subr.mxu0 0.0
      %1208 = vmatpush1.msra.mxu0 0.0
      %1209 = vmatprep.subr.mxu0 0.0
      %1210 = vmatpush1.msra.mxu0 0.0
      %1211 = vmatprep.subr.mxu0 0.0
      %1212 = vmatpush1.msra.mxu0 0.0
      %1213 = vmatprep.subr.mxu0 0.0
      %1214 = vmatpush1.msra.mxu0 0.0
      %1215 = vmatprep.subr.mxu0 0.0
      %1216 = vmatpush1.msra.mxu0 0.0
      %1217 = vmatprep.subr.mxu0 0.0
      %1218 = vmatpush1.msra.mxu0 0.0
      %1219 = vmatprep.subr.mxu0 0.0
      %1220 = vmatpush1.msra.mxu0 0.0
      %1221 = vmatprep.subr.mxu0 0.0
      %1222 = vmatpush1.msra.mxu0 0.0
      %1223 = vmatprep.subr.mxu0 0.0
      %1224 = vmatpush1.msra.mxu0 0.0
      %1225 = vmatprep.subr.mxu0 0.0
      %1226 = vmatpush1.msra.mxu0 0.0
      %1227 = vmatprep.subr.mxu0 0.0
      %1228 = vmatpush1.msra.mxu0 0.0
      %1229 = vmatprep.subr.mxu0 0.0
      %1230 = vmatpush1.msra.mxu0 0.0
      %1231 = vmatprep.subr.mxu0 0.0
      %1232 = vmatpush1.msra.mxu0 0.0
      %1233 = vmatprep.subr.mxu0 0.0
      %1234 = vmatpush1.msra.mxu0 0.0
      %1235 = vmatprep.subr.mxu0 0.0
      %1236 = vmatpush1.msra.mxu0 0.0
      %1237 = vmatprep.subr.mxu0 0.0
      %1238 = vmatpush1.msra.mxu0 0.0
      %1239 = vmatprep.subr.mxu0 0.0
      %1240 = vmatpush1.msra.mxu0 0.0
      %1241 = vmatprep.subr.mxu0 0.0
      %1242 = vmatpush1.msra.mxu0 0.0
      %1243 = vmatprep.subr.mxu0 0.0
      %1244 = vmatpush1.msra.mxu0 0.0
      %1245 = vmatprep.subr.mxu0 0.0
      %1246 = vmatpush1.msra.mxu0 0.0
      %1247 = vmatprep.subr.mxu0 0.0
      %1248 = vmatpush1.msra.mxu0 0.0
      %1249 = vmatprep.subr.mxu0 0.0
      %1250 = vmatpush1.msra.mxu0 0.0
      %1251 = vmatprep.subr.mxu0 0.0
      %1252 = vmatpush1.msra.mxu0 0.0
      %1253 = vmatprep.subr.mxu0 0.0
      %1254 = vmatpush1.msra.mxu0 0.0
      %1255 = vmatprep.subr.mxu0 0.0
      %1256 = vmatpush1.msra.mxu0 0.0
      %1257 = vmatprep.mubr.f32.mxu0 0.0
      %1258 = vmatmul.mubr.f32.gmra.mrb[0].mxu0 %v1166
      %v1259 = vpop.f32.mrb[0].mxu0
      %v1260 = vadd.f32 %v1162, %v1259
      %v1261 = vpop.f32.mrb[0].mxu0
      %v1262 = vadd.f32 %v1162, %v1261
      %1263 = vdwg.mxu0
      %1264 = vmatprep.subr.mxu0 %v1179
      %1265 = vmatpush1.msra.mxu0 %v1176
      %1266 = vmatprep.subr.mxu0 0.0
      %1267 = vmatpush1.msra.mxu0 0.0
      %1268 = vmatprep.subr.mxu0 0.0
      %1269 = vmatpush1.msra.mxu0 0.0
      %1270 = vmatprep.subr.mxu0 0.0
      %1271 = vmatpush1.msra.mxu0 0.0
      %1272 = vmatprep.subr.mxu0 0.0
      %1273 = vmatpush1.msra.mxu0 0.0
      %1274 = vmatprep.subr.mxu0 0.0
      %1275 = vmatpush1.msra.mxu0 0.0
      %1276 = vmatprep.subr.mxu0 0.0
      %1277 = vmatpush1.msra.mxu0 0.0
      %1278 = vmatprep.subr.mxu0 0.0
      %1279 = vmatpush1.msra.mxu0 0.0
      %1280 = vmatprep.subr.mxu0 0.0
      %1281 = vmatpush1.msra.mxu0 0.0
      %1282 = vmatprep.subr.mxu0 0.0
      %1283 = vmatpush1.msra.mxu0 0.0
      %1284 = vmatprep.subr.mxu0 0.0
      %1285 = vmatpush1.msra.mxu0 0.0
      %1286 = vmatprep.subr.mxu0 0.0
      %1287 = vmatpush1.msra.mxu0 0.0
      %1288 = vmatprep.subr.mxu0 0.0
      %1289 = vmatpush1.msra.mxu0 0.0
      %1290 = vmatprep.subr.mxu0 0.0
      %1291 = vmatpush1.msra.mxu0 0.0
      %1292 = vmatprep.subr.mxu0 0.0
      %1293 = vmatpush1.msra.mxu0 0.0
      %1294 = vmatprep.subr.mxu0 0.0
      %1295 = vmatpush1.msra.mxu0 0.0
      %1296 = vmatprep.subr.mxu0 0.0
      %1297 = vmatpush1.msra.mxu0 0.0
      %1298 = vmatprep.subr.mxu0 0.0
      %1299 = vmatpush1.msra.mxu0 0.0
      %1300 = vmatprep.subr.mxu0 0.0
      %1301 = vmatpush1.msra.mxu0 0.0
      %1302 = vmatprep.subr.mxu0 0.0
      %1303 = vmatpush1.msra.mxu0 0.0
      %1304 = vmatprep.subr.mxu0 0.0
      %1305 = vmatpush1.msra.mxu0 0.0
      %1306 = vmatprep.subr.mxu0 0.0
      %1307 = vmatpush1.msra.mxu0 0.0
      %1308 = vmatprep.subr.mxu0 0.0
      %1309 = vmatpush1.msra.mxu0 0.0
      %1310 = vmatprep.subr.mxu0 0.0
      %1311 = vmatpush1.msra.mxu0 0.0
      %1312 = vmatprep.subr.mxu0 0.0
      %1313 = vmatpush1.msra.mxu0 0.0
      %1314 = vmatprep.subr.mxu0 0.0
      %1315 = vmatpush1.msra.mxu0 0.0
      %1316 = vmatprep.subr.mxu0 0.0
      %1317 = vmatpush1.msra.mxu0 0.0
      %1318 = vmatprep.subr.mxu0 0.0
      %1319 = vmatpush1.msra.mxu0 0.0
      %1320 = vmatprep.subr.mxu0 0.0
      %1321 = vmatpush1.msra.mxu0 0.0
      %1322 = vmatprep.subr.mxu0 0.0
      %1323 = vmatpush1.msra.mxu0 0.0
      %1324 = vmatprep.subr.mxu0 0.0
      %1325 = vmatpush1.msra.mxu0 0.0
      %1326 = vmatprep.subr.mxu0 0.0
      %1327 = vmatpush1.msra.mxu0 0.0
      %1328 = vmatprep.mubr.f32.mxu0 0.0
      %1329 = vmatmul.mubr.f32.gmra.mrb[0].mxu0 %v1166
      %v1330 = vpop.f32.mrb[0].mxu0
      %v1331 = vadd.f32 %v1162, %v1330
      %v1332 = vpop.f32.mrb[0].mxu0
      %v1333 = vadd.f32 %v1162, %v1332
      %1334 = vdwg.mxu0
      %1335 = vmatprep.subr.mxu0 %v1185
      %1336 = vmatpush1.msra.mxu0 %v1182
      %1337 = vmatprep.subr.mxu0 0.0
      %1338 = vmatpush1.msra.mxu0 0.0
      %1339 = vmatprep.subr.mxu0 0.0
      %1340 = vmatpush1.msra.mxu0 0.0
      %1341 = vmatprep.subr.mxu0 0.0
      %1342 = vmatpush1.msra.mxu0 0.0
      %1343 = vmatprep.subr.mxu0 0.0
      %1344 = vmatpush1.msra.mxu0 0.0
      %1345 = vmatprep.subr.mxu0 0.0
      %1346 = vmatpush1.msra.mxu0 0.0
      %1347 = vmatprep.subr.mxu0 0.0
      %1348 = vmatpush1.msra.mxu0 0.0
      %1349 = vmatprep.subr.mxu0 0.0
      %1350 = vmatpush1.msra.mxu0 0.0
      %1351 = vmatprep.subr.mxu0 0.0
      %1352 = vmatpush1.msra.mxu0 0.0
      %1353 = vmatprep.subr.mxu0 0.0
      %1354 = vmatpush1.msra.mxu0 0.0
      %1355 = vmatprep.subr.mxu0 0.0
      %1356 = vmatpush1.msra.mxu0 0.0
      %1357 = vmatprep.subr.mxu0 0.0
      %1358 = vmatpush1.msra.mxu0 0.0
      %1359 = vmatprep.subr.mxu0 0.0
      %1360 = vmatpush1.msra.mxu0 0.0
      %1361 = vmatprep.subr.mxu0 0.0
      %1362 = vmatpush1.msra.mxu0 0.0
      %1363 = vmatprep.subr.mxu0 0.0
      %1364 = vmatpush1.msra.mxu0 0.0
      %1365 = vmatprep.subr.mxu0 0.0
      %1366 = vmatpush1.msra.mxu0 0.0
      %1367 = vmatprep.subr.mxu0 0.0
      %1368 = vmatpush1.msra.mxu0 0.0
      %1369 = vmatprep.subr.mxu0 0.0
      %1370 = vmatpush1.msra.mxu0 0.0
      %1371 = vmatprep.subr.mxu0 0.0
      %1372 = vmatpush1.msra.mxu0 0.0
      %1373 = vmatprep.subr.mxu0 0.0
      %1374 = vmatpush1.msra.mxu0 0.0
      %1375 = vmatprep.subr.mxu0 0.0
      %1376 = vmatpush1.msra.mxu0 0.0
      %1377 = vmatprep.subr.mxu0 0.0
      %1378 = vmatpush1.msra.mxu0 0.0
      %1379 = vmatprep.subr.mxu0 0.0
      %1380 = vmatpush1.msra.mxu0 0.0
      %1381 = vmatprep.subr.mxu0 0.0
      %1382 = vmatpush1.msra.mxu0 0.0
      %1383 = vmatprep.subr.mxu0 0.0
      %1384 = vmatpush1.msra.mxu0 0.0
      %1385 = vmatprep.subr.mxu0 0.0
      %1386 = vmatpush1.msra.mxu0 0.0
      %1387 = vmatprep.subr.mxu0 0.0
      %1388 = vmatpush1.msra.mxu0 0.0
      %1389 = vmatprep.subr.mxu0 0.0
      %1390 = vmatpush1.msra.mxu0 0.0
      %1391 = vmatprep.subr.mxu0 0.0
      %1392 = vmatpush1.msra.mxu0 0.0
      %1393 = vmatprep.subr.mxu0 0.0
      %1394 = vmatpush1.msra.mxu0 0.0
      %1395 = vmatprep.subr.mxu0 0.0
      %1396 = vmatpush1.msra.mxu0 0.0
      %1397 = vmatprep.subr.mxu0 0.0
      %1398 = vmatpush1.msra.mxu0 0.0
      %1399 = vmatprep.mubr.f32.mxu0 0.0
      %1400 = vmatmul.mubr.f32.gmra.mrb[0].mxu0 %v1166
      %v1401 = vpop.f32.mrb[0].mxu0
      %v1402 = vadd.f32 %v1162, %v1401
      %v1403 = vpop.f32.mrb[0].mxu0
      %v1404 = vadd.f32 %v1162, %v1403
      %1405 = vdwg.mxu0
      %1406 = vmatprep.subr.mxu0 %v1191
      %1407 = vmatpush1.msra.mxu0 %v1188
      %1408 = vmatprep.subr.mxu0 0.0
      %1409 = vmatpush1.msra.mxu0 0.0
      %1410 = vmatprep.subr.mxu0 0.0
      %1411 = vmatpush1.msra.mxu0 0.0
      %1412 = vmatprep.subr.mxu0 0.0
      %1413 = vmatpush1.msra.mxu0 0.0
      %1414 = vmatprep.subr.mxu0 0.0
      %1415 = vmatpush1.msra.mxu0 0.0
      %1416 = vmatprep.subr.mxu0 0.0
      %1417 = vmatpush1.msra.mxu0 0.0
      %1418 = vmatprep.subr.mxu0 0.0
      %1419 = vmatpush1.msra.mxu0 0.0
      %1420 = vmatprep.subr.mxu0 0.0
      %1421 = vmatpush1.msra.mxu0 0.0
      %1422 = vmatprep.subr.mxu0 0.0
      %1423 = vmatpush1.msra.mxu0 0.0
      %1424 = vmatprep.subr.mxu0 0.0
      %1425 = vmatpush1.msra.mxu0 0.0
      %1426 = vmatprep.subr.mxu0 0.0
      %1427 = vmatpush1.msra.mxu0 0.0
      %1428 = vmatprep.subr.mxu0 0.0
      %1429 = vmatpush1.msra.mxu0 0.0
      %1430 = vmatprep.subr.mxu0 0.0
      %1431 = vmatpush1.msra.mxu0 0.0
      %1432 = vmatprep.subr.mxu0 0.0
      %1433 = vmatpush1.msra.mxu0 0.0
      %1434 = vmatprep.subr.mxu0 0.0
      %1435 = vmatpush1.msra.mxu0 0.0
      %1436 = vmatprep.subr.mxu0 0.0
      %1437 = vmatpush1.msra.mxu0 0.0
      %1438 = vmatprep.subr.mxu0 0.0
      %1439 = vmatpush1.msra.mxu0 0.0
      %1440 = vmatprep.subr.mxu0 0.0
      %1441 = vmatpush1.msra.mxu0 0.0
      %1442 = vmatprep.subr.mxu0 0.0
      %1443 = vmatpush1.msra.mxu0 0.0
      %1444 = vmatprep.subr.mxu0 0.0
      %1445 = vmatpush1.msra.mxu0 0.0
      %1446 = vmatprep.subr.mxu0 0.0
      %1447 = vmatpush1.msra.mxu0 0.0
      %1448 = vmatprep.subr.mxu0 0.0
      %1449 = vmatpush1.msra.mxu0 0.0
      %1450 = vmatprep.subr.mxu0 0.0
      %1451 = vmatpush1.msra.mxu0 0.0
      %1452 = vmatprep.subr.mxu0 0.0
      %1453 = vmatpush1.msra.mxu0 0.0
      %1454 = vmatprep.subr.mxu0 0.0
      %1455 = vmatpush1.msra.mxu0 0.0
      %1456 = vmatprep.subr.mxu0 0.0
      %1457 = vmatpush1.msra.mxu0 0.0
      %1458 = vmatprep.subr.mxu0 0.0
      %1459 = vmatpush1.msra.mxu0 0.0
      %1460 = vmatprep.subr.mxu0 0.0
      %1461 = vmatpush1.msra.mxu0 0.0
      %1462 = vmatprep.subr.mxu0 0.0
      %1463 = vmatpush1.msra.mxu0 0.0
      %1464 = vmatprep.subr.mxu0 0.0
      %1465 = vmatpush1.msra.mxu0 0.0
      %1466 = vmatprep.subr.mxu0 0.0
      %1467 = vmatpush1.msra.mxu0 0.0
      %1468 = vmatprep.subr.mxu0 0.0
      %1469 = vmatpush1.msra.mxu0 0.0
      %1470 = vmatprep.mubr.f32.mxu0 0.0
      %1471 = vmatmul.mubr.f32.gmra.mrb[0].mxu0 %v1166
      %v1472 = vpop.f32.mrb[0].mxu0
      %v1473 = vadd.f32 %v1162, %v1472
      %v1474 = vpop.f32.mrb[0].mxu0
      %v1475 = vadd.f32 %v1162, %v1474
      %1476 = vdwg.mxu0
      %v1477 = vpack.c.bf16 %v1260, %v1260
      %v1478 = vpack.c.bf16 %v1262, %v1262
      %v1479 = vpack.c.bf16 %v1331, %v1331
      %v1480 = vpack.c.bf16 %v1333, %v1333
      %v1481 = vpack.c.bf16 %v1402, %v1402
      %v1482 = vpack.c.bf16 %v1404, %v1404
      %v1483 = vpack.c.bf16 %v1473, %v1473
      %v1484 = vpack.c.bf16 %v1475, %v1475
      %v1493 = vcombine.low %v1477, %v1478
      %v1494 = vcombine.low %v1479, %v1480
      %v1496 = vunpack.c.l.s4 1983009808
      %v1497 = vunpack.c.0.s8 %v1496
      %v1498 = vlaneseq
      %v1499 = vshrl.u32 %v1498, 7
      %v1500 = vsub.s32 %v1497, %v1499
      %v1501 = vrot.slane %v1493, %v1500
      %v1503 = vunpack.c.l.s4 1983009808
      %v1504 = vunpack.c.0.s8 %v1503
      %v1505 = vlaneseq
      %v1506 = vshrl.u32 %v1505, 7
      %v1507 = vsub.s32 %v1504, %v1506
      %v1508 = vrot.slane %v1494, %v1507
      %v1509 = vcombine.low %v1501, %v1508
      %v1510 = vcombine.low %v1481, %v1482
      %v1511 = vcombine.low %v1483, %v1484
      %v1513 = vunpack.c.l.s4 1983009808
      %v1514 = vunpack.c.0.s8 %v1513
      %v1515 = vlaneseq
      %v1516 = vshrl.u32 %v1515, 7
      %v1517 = vsub.s32 %v1514, %v1516
      %v1518 = vrot.slane %v1510, %v1517
      %v1520 = vunpack.c.l.s4 1983009808
      %v1521 = vunpack.c.0.s8 %v1520
      %v1522 = vlaneseq
      %v1523 = vshrl.u32 %v1522, 7
      %v1524 = vsub.s32 %v1521, %v1523
      %v1525 = vrot.slane %v1511, %v1524
      %v1526 = vcombine.low %v1518, %v1525
      %1529 = vst [vmem:[%s460] sm:$0xff] %v1509
      %1530 = vst [vmem:[%s460 + $0x8] sm:$0xff] %v1526
      %v1531 = vpack.c.bf16 %v572, %v572
      %v1532 = vpack.c.bf16 %v574, %v574
      %v1533 = vpack.c.bf16 %v643, %v643
      %v1534 = vpack.c.bf16 %v645, %v645
      %v1535 = vpack.c.bf16 %v714, %v714
      %v1536 = vpack.c.bf16 %v716, %v716
      %v1537 = vpack.c.bf16 %v785, %v785
      %v1538 = vpack.c.bf16 %v787, %v787
      %v1547 = vcombine.low %v1531, %v1532
      %v1548 = vcombine.low %v1533, %v1534
      %v1550 = vunpack.c.l.s4 1983009808
      %v1551 = vunpack.c.0.s8 %v1550
      %v1552 = vlaneseq
      %v1553 = vshrl.u32 %v1552, 7
      %v1554 = vsub.s32 %v1551, %v1553
      %v1555 = vrot.slane %v1547, %v1554
      %v1557 = vunpack.c.l.s4 1983009808
      %v1558 = vunpack.c.0.s8 %v1557
      %v1559 = vlaneseq
      %v1560 = vshrl.u32 %v1559, 7
      %v1561 = vsub.s32 %v1558, %v1560
      %v1562 = vrot.slane %v1548, %v1561
      %v1563 = vcombine.low %v1555, %v1562
      %v1564 = vcombine.low %v1535, %v1536
      %v1565 = vcombine.low %v1537, %v1538
      %v1567 = vunpack.c.l.s4 1983009808
      %v1568 = vunpack.c.0.s8 %v1567
      %v1569 = vlaneseq
      %v1570 = vshrl.u32 %v1569, 7
      %v1571 = vsub.s32 %v1568, %v1570
      %v1572 = vrot.slane %v1564, %v1571
      %v1574 = vunpack.c.l.s4 1983009808
      %v1575 = vunpack.c.0.s8 %v1574
      %v1576 = vlaneseq
      %v1577 = vshrl.u32 %v1576, 7
      %v1578 = vsub.s32 %v1575, %v1577
      %v1579 = vrot.slane %v1565, %v1578
      %v1580 = vcombine.low %v1572, %v1579
      %1583 = vst [vmem:[%s470] sm:$0xff] %v1563
      %1584 = vst [vmem:[%s470 + $0x8] sm:$0xff] %v1580
      %v1585 = vpack.c.bf16 %v1091, %v1091
      %v1586 = vpack.c.bf16 %v1092, %v1092
      %v1587 = vpack.c.bf16 %v1093, %v1093
      %v1588 = vpack.c.bf16 %v1094, %v1094
      %v1589 = vpack.c.bf16 %v1095, %v1095
      %v1590 = vpack.c.bf16 %v1096, %v1096
      %v1591 = vpack.c.bf16 %v1097, %v1097
      %v1592 = vpack.c.bf16 %v1098, %v1098
      %v1601 = vcombine.low %v1585, %v1586
      %v1602 = vcombine.low %v1587, %v1588
      %v1604 = vunpack.c.l.s4 1983009808
      %v1605 = vunpack.c.0.s8 %v1604
      %v1606 = vlaneseq
      %v1607 = vshrl.u32 %v1606, 7
      %v1608 = vsub.s32 %v1605, %v1607
      %v1609 = vrot.slane %v1601, %v1608
      %v1611 = vunpack.c.l.s4 1983009808
      %v1612 = vunpack.c.0.s8 %v1611
      %v1613 = vlaneseq
      %v1614 = vshrl.u32 %v1613, 7
      %v1615 = vsub.s32 %v1612, %v1614
      %v1616 = vrot.slane %v1602, %v1615
      %v1617 = vcombine.low %v1609, %v1616
      %v1618 = vcombine.low %v1589, %v1590
      %v1619 = vcombine.low %v1591, %v1592
      %v1621 = vunpack.c.l.s4 1983009808
      %v1622 = vunpack.c.0.s8 %v1621
      %v1623 = vlaneseq
      %v1624 = vshrl.u32 %v1623, 7
      %v1625 = vsub.s32 %v1622, %v1624
      %v1626 = vrot.slane %v1618, %v1625
      %v1628 = vunpack.c.l.s4 1983009808
      %v1629 = vunpack.c.0.s8 %v1628
      %v1630 = vlaneseq
      %v1631 = vshrl.u32 %v1630, 7
      %v1632 = vsub.s32 %v1629, %v1631
      %v1633 = vrot.slane %v1619, %v1632
      %v1634 = vcombine.low %v1626, %v1633
      %1637 = vst [vmem:[%s480] sm:$0xff] %v1617
      %1638 = vst [vmem:[%s480 + $0x8] sm:$0xff] %v1634
      %s1639 = smul.u32 8, %s27
      %p1640 = scmp.lt.s32.totalorder %s26, 1
      %s1641 = scalar_select %p1640, %s26, 1
      %p1642 = scmp.lt.s32.totalorder %s1639, 7
      %s1643 = scalar_select %p1642, %s1639, 7
      %s1644 = smul.addr %s1641, 8
      %s1645 = sadd.s32 %s1643, %s1644
      %s1646 = smul.addr %s1645, 2
      %s1647 = scalar_lea.vmem %s8, %s1646
      %s1648 = smul.u32 8, %s27
      %p1649 = scmp.lt.s32.totalorder %s26, 1
      %s1650 = scalar_select %p1649, %s26, 1
      %p1651 = scmp.lt.s32.totalorder %s1648, 7
      %s1652 = scalar_select %p1651, %s1648, 7
      %s1653 = smul.addr %s1650, 8
      %s1654 = sadd.s32 %s1652, %s1653
      %s1655 = smul.addr %s1654, 2
      %s1656 = scalar_lea.vmem %s9, %s1655
      %s1657 = smul.u32 8, %s27
      %p1658 = scmp.lt.s32.totalorder %s26, 1
      %s1659 = scalar_select %p1658, %s26, 1
      %p1660 = scmp.lt.s32.totalorder %s1657, 7
      %s1661 = scalar_select %p1660, %s1657, 7
      %s1662 = smul.addr %s1659, 8
      %s1663 = sadd.s32 %s1661, %s1662
      %s1664 = smul.addr %s1663, 2
      %s1665 = scalar_lea.vmem %s10, %s1664
      // Predicated region
      $region53: #{autoencoder_kl_forward.1} parent=51 // pred_check
        %p1666 = pneg %p236
      $region54: #{autoencoder_kl_forward.1} parent=51 // pred_check_branch
        %1668 = sbr.rel (%p1666) target = $region56
      $region55: #{autoencoder_kl_forward.1} parent=51 // pred_region
        %s1669 = smul.u32 8, %s27
      $region56: #{autoencoder_kl_forward.1} parent=51 // pred_fallthru
        _
      // Predicated region
      $region57: #{autoencoder_kl_forward.1} parent=51 // pred_check
        %p1670 = pneg %p264
      $region58: #{autoencoder_kl_forward.1} parent=51 // pred_check_branch
        %1672 = sbr.rel (%p1670) target = $region60
      $region59: #{autoencoder_kl_forward.1} parent=51 // pred_region
        %s1673 = smul.u32 8, %s27
      $region60: #{autoencoder_kl_forward.1} parent=51 // pred_fallthru
        _
      // Predicated region
      $region61: #{autoencoder_kl_forward.1} parent=51 // pred_check
        %p1674 = pneg %p292
      $region62: #{autoencoder_kl_forward.1} parent=51 // pred_check_branch
        %1676 = sbr.rel (%p1674) target = $region64
      $region63: #{autoencoder_kl_forward.1} parent=51 // pred_region
        %s1677 = smul.u32 8, %s27
      $region64: #{autoencoder_kl_forward.1} parent=51 // pred_fallthru
        _
    $region52: #{autoencoder_kl_forward.1} parent=5 // pred_fallthru
      _
    %p1678 = scmp.le.s32.totalorder 2, %s17
    // Predicated region
    $region65: #{autoencoder_kl_forward.1} parent=5 // pred_check
      %p1679 = pneg %p1678
    $region66: #{autoencoder_kl_forward.1} parent=5 // pred_check_branch
      %1681 = sbr.rel (%p1679) target = $region68
    $region67: #{autoencoder_kl_forward.1} parent=5 // pred_region
      %s1682 = ssub.s32 %s17, 2
      // Predicated region
      $region69: #{autoencoder_kl_forward.1} parent=67 // pred_check
        %p1683 = pneg %p242
      $region70: #{autoencoder_kl_forward.1} parent=67 // pred_check_branch
        %1685 = sbr.rel (%p1683) target = $region72
      $region71: #{autoencoder_kl_forward.1} parent=67 // pred_region
        %s1686 = smul.u32 8, %s29
        %p1687 = scmp.lt.s32.totalorder %s28, 1
        %s1688 = scalar_select %p1687, %s28, 1
        %p1689 = scmp.lt.s32.totalorder %s1686, 7
        %s1690 = scalar_select %p1689, %s1686, 7
        %s1691 = smul.addr %s1688, 8
        %s1692 = sadd.s32 %s1690, %s1691
        %s1693 = smul.addr %s1692, 2
        %s1694 = scalar_lea.vmem %s8, %s1693
      $region72: #{autoencoder_kl_forward.1} parent=67 // pred_fallthru
        _
      // Predicated region
      $region73: #{autoencoder_kl_forward.1} parent=67 // pred_check
        %p1695 = pneg %p270
      $region74: #{autoencoder_kl_forward.1} parent=67 // pred_check_branch
        %1697 = sbr.rel (%p1695) target = $region76
      $region75: #{autoencoder_kl_forward.1} parent=67 // pred_region
        %s1698 = smul.u32 8, %s29
        %p1699 = scmp.lt.s32.totalorder %s28, 1
        %s1700 = scalar_select %p1699, %s28, 1
        %p1701 = scmp.lt.s32.totalorder %s1698, 7
        %s1702 = scalar_select %p1701, %s1698, 7
        %s1703 = smul.addr %s1700, 8
        %s1704 = sadd.s32 %s1702, %s1703
        %s1705 = smul.addr %s1704, 2
        %s1706 = scalar_lea.vmem %s9, %s1705
      $region76: #{autoencoder_kl_forward.1} parent=67 // pred_fallthru
        _
      // Predicated region
      $region77: #{autoencoder_kl_forward.1} parent=67 // pred_check
        %p1707 = pneg %p298
      $region78: #{autoencoder_kl_forward.1} parent=67 // pred_check_branch
        %1709 = sbr.rel (%p1707) target = $region80
      $region79: #{autoencoder_kl_forward.1} parent=67 // pred_region
        %s1710 = smul.u32 8, %s29
        %p1711 = scmp.lt.s32.totalorder %s28, 1
        %s1712 = scalar_select %p1711, %s28, 1
        %p1713 = scmp.lt.s32.totalorder %s1710, 7
        %s1714 = scalar_select %p1713, %s1710, 7
        %s1715 = smul.addr %s1712, 8
        %s1716 = sadd.s32 %s1714, %s1715
        %s1717 = smul.addr %s1716, 2
        %s1718 = scalar_lea.vmem %s10, %s1717
      $region80: #{autoencoder_kl_forward.1} parent=67 // pred_fallthru
        _
    $region68: #{autoencoder_kl_forward.1} parent=5 // pred_fallthru
      _
  $region6: #{autoencoder_kl_forward.1} parent=0 // loop_footer
    %s21 = sadd.s32 1, %s17
  $region7: #{autoencoder_kl_forward.1} parent=0 // loop_footer_branch
    %16 = sbr.rel target = $region3
  $region8: #{autoencoder_kl_forward.1} parent=0 // loop_exit
    _

</llo_original>
